<compile_context>
chip_gen: v7x
topology: tpu7x:2x2x1
jax: 0.10.0
libtpu: 0.0.40
codegen_flags: <defaults>
</compile_context>

<pallas_src>
import functools

import jax
import jax.numpy as jnp
from jax.experimental import pallas as pl


def _make_kernel(impute_weight, T, Bp, H, TS, b_true):
    f32 = jnp.float32
    bf16 = jnp.bfloat16
    iw = float(impute_weight)
    inv_b = 1.0 / float(b_true)
    H4 = 4 * H

    def kernel(
        vals_ref, msks_ref, mw_ref, dlts_ref,
        statics_ref, smask_ref, inv_s_ref, labels_ref, valid_ref,
        Wsfr_ref, bsfr_ref,
        W1_ref, b1_ref, W2_ref, b2_ref, W3_ref, b3_ref,
        Wtd_ref, btd_ref,
        Wst_ref, ball_ref,
        Wreal_ref, Whf_ref,
        Wgx_ref, Wgm_ref, bg_ref,
        Wout_ref, bout_ref,
        imp_ref, ypred_ref, loss_ref,
    ):
        # ---------------- MultiModal static branch (runs once, f32) -------
        statics = statics_ref[...]
        smask = smask_ref[...]
        s_h = jnp.dot(statics, Wsfr_ref[...],
                      preferred_element_type=f32) + bsfr_ref[...]
        s_tc = smask * statics + (1.0 - smask) * s_h
        # exact 1/(sum(smask)+1e-5) is precomputed in the wrapper
        s_loss = (jnp.sum(jnp.abs(statics - s_tc) * smask, keepdims=True)
                  * inv_s_ref[...])

        # dense1/2/3 + ReLU (dropout = identity in eval mode)
        hh = jnp.maximum(jnp.dot(s_tc, W1_ref[...],
                                 preferred_element_type=f32) + b1_ref[...], 0.0)
        hh = jnp.maximum(jnp.dot(hh, W2_ref[...],
                                 preferred_element_type=f32) + b2_ref[...], 0.0)
        hh = jnp.maximum(jnp.dot(hh, W3_ref[...],
                                 preferred_element_type=f32) + b3_ref[...], 0.0)

        h = hh
        c = jnp.zeros_like(h)

        # time-invariant static contribution + pre-folded x-side biases
        xs = jnp.dot(s_tc, Wst_ref[...],
                     preferred_element_type=f32) + ball_ref[...]

        # ---------------- hoisted batched (over T) matmuls ----------------
        vals = vals_ref[...]            # (T*Bp, TS) f32
        msks = msks_ref[...]            # (T*Bp, TS) f32
        mw = mw_ref[...]                # masks * exact 1/(sum(m_t)+1e-5)
        dlts = dlts_ref[...]            # (T*Bp, TS) f32

        Whf = Whf_ref[...]              # (H, 4H+TS)  bf16
        Wgx = Wgx_ref[...]              # (TS, 4H)    bf16

        gamma_all = jnp.exp(-jnp.maximum(
            jnp.dot(dlts.astype(bf16), Wtd_ref[...],
                    preferred_element_type=f32) + btd_ref[...], 0.0))
        xr_all = jnp.dot(vals.astype(bf16), Wreal_ref[...],
                         preferred_element_type=f32)            # (T*Bp, TS)
        gm_all = (jnp.dot(msks.astype(bf16), Wgm_ref[...],
                          preferred_element_type=f32) + bg_ref[...])

        xl = jnp.zeros((Bp, TS), f32)   # vector x_loss accumulator
        cc_list = []

        # ---------------- serial recurrence (statically unrolled) ---------
        for t in range(T):
            r0 = t * Bp
            x = vals[r0:r0 + Bp, :]
            m = msks[r0:r0 + Bp, :]

            h = h * gamma_all[r0:r0 + Bp, :]

            # fused recurrent matmul: [gates_h | hist_reg(h)] -> (Bp, 4H+TS)
            hf = jnp.dot(h.astype(bf16), Whf, preferred_element_type=f32)
            gates_h = hf[:, :H4]
            x_c = hf[:, H4:] + xr_all[r0:r0 + Bp, :] + xs

            xl = xl + jnp.abs(x - x_c) * mw[r0:r0 + Bp, :]
            c_c = m * x + (1.0 - m) * x_c
            cc_list.append(c_c)

            # LSTMCell; gate columns pre-ordered [i | f | o | g]
            gates = (jnp.dot(c_c.astype(bf16), Wgx,
                             preferred_element_type=f32)
                     + gm_all[r0:r0 + Bp, :] + gates_h)
            sig = jax.nn.sigmoid(gates)            # one full-vreg EUP push
            i_g = sig[:, 0 * H:1 * H]
            f_g = sig[:, 1 * H:2 * H]
            o_g = sig[:, 2 * H:3 * H]
            g_g = jnp.tanh(gates[:, 3 * H:4 * H])  # one small tanh push
            c = f_g * c + i_g * g_g
            h = o_g * jnp.tanh(c)

        # single lane-dense store of every step's imputation
        imp_ref[...] = jnp.concatenate(cc_list, axis=1)     # (Bp, T*TS)

        x_loss = jnp.sum(xl, keepdims=True)                 # (1, 1)

        # ---------------- prediction head + data-dependent loss -----------
        z = jnp.dot(h, Wout_ref[...],
                    preferred_element_type=f32) + bout_ref[...]      # (Bp,1)
        y = labels_ref[...]
        valid = valid_ref[...]
        bce_el = (jnp.maximum(z, 0.0) - z * y
                  + jnp.log(1.0 + jnp.exp(-jnp.abs(z))))
        bce = jnp.sum(bce_el * valid, keepdims=True) * inv_b

        loss_ref[...] = bce + iw * x_loss + s_loss
        ypred_ref[...] = jax.nn.sigmoid(z)

    return kernel


def init_params(key, S, TS, H):
    keys = jax.random.split(key, 22)

    def w(k, shape, scale=0.1):
        return jax.random.normal(k, shape, dtype=jnp.float32) * scale

    return {
        "Wsfr": w(keys[0], (S, S)), "bsfr": w(keys[1], (S,)),
        "W1": w(keys[2], (H, S)), "b1": w(keys[3], (H,)),
        "W2": w(keys[4], (H, H)), "b2": w(keys[5], (H,)),
        "W3": w(keys[6], (H, H)), "b3": w(keys[7], (H,)),
        "Wtd": w(keys[8], (H, TS)), "btd": w(keys[9], (H,)),
        "Whist": w(keys[10], (TS, H)), "bhist": w(keys[11], (TS,)),
        "Wst": w(keys[12], (TS, S)), "bst": w(keys[13], (TS,)),
        "Wreal": w(keys[14], (TS, TS)), "breal": w(keys[15], (TS,)),
        "Wih": w(keys[16], (4 * H, 2 * TS)), "bih": w(keys[17], (4 * H,)),
        "Whh": w(keys[18], (4 * H, H)), "bhh": w(keys[19], (4 * H,)),
        "Wout": w(keys[20], (1, H)), "bout": w(keys[21], (1,)),
    }


def _reorder_gates(w):
    """PyTorch LSTMCell gate order [i, f, g, o] -> [i, f, o, g] (axis 0)."""
    i, f, g, o = jnp.split(w, 4, axis=0)
    return jnp.concatenate([i, f, o, g], axis=0)


def crossnet_forward(params, values, masks, deltas, statics, static_masks,
                     labels, impute_weight):
    f32 = jnp.float32
    bf16 = jnp.bfloat16
    B, T, TS = values.shape
    S = statics.shape[1]
    H = params["W1"].shape[0]
    H4 = 4 * H

    # ---- layout plumbing (plain JAX glue) --------------------------------
    Bp = ((B + 7) // 8) * 8            # pad batch to a sublane multiple

    def pad_b(a):
        pad = [(0, Bp - B)] + [(0, 0)] * (a.ndim - 1)
        return jnp.pad(a, pad)

    def to_flat(a):                    # (B,T,TS) -> (T*Bp, TS), time-major
        a = pad_b(a.astype(f32))
        return jnp.transpose(a, (1, 0, 2)).reshape(T * Bp, TS)

    masks_f = masks.astype(f32)
    # exact per-step 1/(sum(m_t)+1e-5), folded into a weighted mask
    inv_den_t = 1.0 / (jnp.sum(masks_f, axis=(0, 2)) + 1e-5)       # (T,)
    mweighted = masks_f * inv_den_t[None, :, None]

    vals_f = to_flat(values)
    msks_f = to_flat(masks_f)
    mw_f = to_flat(mweighted)
    dlts_f = to_flat(deltas)

    statics_p = pad_b(statics.astype(f32))
    smask_p = pad_b(static_masks.astype(f32))
    inv_s = (1.0 / (jnp.sum(smask_p) + 1e-5)).reshape(1, 1)        # exact
    labels_p = pad_b(labels.reshape(B, 1).astype(f32))
    valid = (jnp.arange(Bp) < B).astype(f32).reshape(Bp, 1)

    # ---- weight layout: transposed, fused, gate-reordered, bf16 ----------
    Wsfr_t = params["Wsfr"].T
    bsfr = params["bsfr"].reshape(1, S)
    W1_t, b1 = params["W1"].T, params["b1"].reshape(1, H)
    W2_t, b2 = params["W2"].T, params["b2"].reshape(1, H)
    W3_t, b3 = params["W3"].T, params["b3"].reshape(1, H)
    Wtd_t = params["Wtd"].T.astype(bf16)
    btd = params["btd"].reshape(1, H)
    Wst_t = params["Wst"].T                                        # (S, TS)
    b_all = (params["bhist"] + params["bst"] + params["breal"]).reshape(1, TS)
    Wreal_t = params["Wreal"].T.astype(bf16)                       # (TS, TS)
    # fused recurrent RHS: [Whh^T (gates reordered) | Whist^T] -> (H, 4H+TS)
    Whf = jnp.concatenate([_reorder_gates(params["Whh"]).T,
                           params["Whist"].T], axis=1).astype(bf16)
    Wgx = _reorder_gates(params["Wih"][:, :TS]).T.astype(bf16)     # (TS, 4H)
    Wgm = _reorder_gates(params["Wih"][:, TS:]).T.astype(bf16)     # (TS, 4H)
    bg = _reorder_gates(params["bih"] + params["bhh"]).reshape(1, H4)
    Wout_t, bout = params["Wout"].T, params["bout"].reshape(1, 1)

    out_shape = (
        jax.ShapeDtypeStruct((Bp, T * TS), f32),   # imputations, lane-dense
        jax.ShapeDtypeStruct((Bp, 1), f32),        # sigmoid predictions
        jax.ShapeDtypeStruct((1, 1), f32),         # data-dependent loss
    )

    kernel = _make_kernel(impute_weight, T, Bp, H, TS, B)

    flops = 2 * (T * Bp * TS * (H + TS + H4)              # hoisted batched
                 + T * Bp * (H * (H4 + TS) + TS * H4)     # in-loop recurrent
                 + Bp * (S * S + S * H + 2 * H * H + S * TS + H))
    transcendentals = T * Bp * (H + H4 + 2 * H) + 4 * Bp
    bytes_accessed = (4 * (4 * T * Bp * TS + Bp * (T * TS + 2 * S + 4))
                      + 2 * (H * (H4 + TS) + 2 * TS * H4 + TS * H + TS * TS)
                      + 4 * (S * S + S * H + 2 * H * H + S * TS + H))
    cost = pl.CostEstimate(flops=int(flops),
                           transcendentals=int(transcendentals),
                           bytes_accessed=int(bytes_accessed))

    # Single program, no grid: total footprint is a few hundred KB, far under
    # the VMEM limit on every generation — no BlockSpec pipelining needed.
    imp, y_pred, loss_k = pl.pallas_call(
        kernel, out_shape=out_shape, cost_estimate=cost,
    )(vals_f, msks_f, mw_f, dlts_f,
      statics_p, smask_p, inv_s, labels_p, valid,
      Wsfr_t, bsfr, W1_t, b1, W2_t, b2, W3_t, b3,
      Wtd_t, btd, Wst_t, b_all, Wreal_t, Whf, Wgx, Wgm, bg, Wout_t, bout)

    # ---- weight-only regularization terms (plain JAX, outside kernel) ----
    s_reg = impute_weight * 0.1 * jnp.sum(jnp.abs(jnp.diagonal(params["Wsfr"])))
    r_loss = (0.01 * (jnp.sum(jnp.abs(params["Wreal"]))
                      + jnp.sum(jnp.abs(params["Whist"]))
                      + jnp.sum(jnp.abs(params["Wst"])))
              + 0.1 * jnp.sum(jnp.abs(jnp.diagonal(params["Wreal"]))))

    return {
        "loss": loss_k[0, 0] + r_loss + s_reg,
        "predictions": y_pred[:B],
        "imputations": imp.reshape(Bp, T, TS)[:B],
        "labels": labels,
    }


if __name__ == "__main__":
    B, S, TS, H, T = 4, 8, 8, 32, 8
    impute_weight = 0.3

    key = jax.random.PRNGKey(0)
    k1, k2, k3, k4, k5, k6, kp = jax.random.split(key, 7)
    values = jax.random.normal(k1, (B, T, TS), jnp.float32)
    masks = (jax.random.uniform(k2, (B, T, TS)) > 0.3).astype(jnp.float32)
    deltas = jax.random.uniform(k3, (B, T, TS), dtype=jnp.float32)
    statics = jax.random.normal(k4, (B, S), jnp.float32)
    static_masks = (jax.random.uniform(k5, (B, S)) > 0.3).astype(jnp.float32)
    labels = (jax.random.uniform(k6, (B,)) > 0.5).astype(jnp.float32)

    params = init_params(kp, S, TS, H)

    # jit the whole forward end-to-end so the pad/transpose/concat glue and
    # the pallas_call are scheduled together.
    fwd = jax.jit(functools.partial(crossnet_forward,
                                    impute_weight=impute_weight))
    out = fwd(params, values, masks, deltas, statics, static_masks, labels)
    jax.block_until_ready(out)
    assert out["predictions"].shape == (B, 1)
    assert out["imputations"].shape == (B, T, TS)
    assert out["loss"].shape == ()
    print("KERNEL_OK")
</pallas_src>

<mosaic_0001>
module attributes {stable_mosaic.version = 11 : i64} {
  func.func @kernel(%arg0: memref<64x8xf32, #tpu.memory_space<vmem>>, %arg1: memref<64x8xf32, #tpu.memory_space<vmem>>, %arg2: memref<64x8xf32, #tpu.memory_space<vmem>>, %arg3: memref<64x8xf32, #tpu.memory_space<vmem>>, %arg4: memref<8x8xf32, #tpu.memory_space<vmem>>, %arg5: memref<8x8xf32, #tpu.memory_space<vmem>>, %arg6: memref<1x1xf32, #tpu.memory_space<vmem>>, %arg7: memref<8x1xf32, #tpu.memory_space<vmem>>, %arg8: memref<8x1xf32, #tpu.memory_space<vmem>>, %arg9: memref<8x8xf32, #tpu.memory_space<vmem>>, %arg10: memref<1x8xf32, #tpu.memory_space<vmem>>, %arg11: memref<8x32xf32, #tpu.memory_space<vmem>>, %arg12: memref<1x32xf32, #tpu.memory_space<vmem>>, %arg13: memref<32x32xf32, #tpu.memory_space<vmem>>, %arg14: memref<1x32xf32, #tpu.memory_space<vmem>>, %arg15: memref<32x32xf32, #tpu.memory_space<vmem>>, %arg16: memref<1x32xf32, #tpu.memory_space<vmem>>, %arg17: memref<8x32xbf16, #tpu.memory_space<vmem>>, %arg18: memref<1x32xf32, #tpu.memory_space<vmem>>, %arg19: memref<8x8xf32, #tpu.memory_space<vmem>>, %arg20: memref<1x8xf32, #tpu.memory_space<vmem>>, %arg21: memref<8x8xbf16, #tpu.memory_space<vmem>>, %arg22: memref<32x136xbf16, #tpu.memory_space<vmem>>, %arg23: memref<8x128xbf16, #tpu.memory_space<vmem>>, %arg24: memref<8x128xbf16, #tpu.memory_space<vmem>>, %arg25: memref<1x128xf32, #tpu.memory_space<vmem>>, %arg26: memref<32x1xf32, #tpu.memory_space<vmem>>, %arg27: memref<1x1xf32, #tpu.memory_space<vmem>>, %arg28: memref<8x64xf32, #tpu.memory_space<vmem>>, %arg29: memref<8x1xf32, #tpu.memory_space<vmem>>, %arg30: memref<1x1xf32, #tpu.memory_space<vmem>>) attributes {dimension_semantics = [], scalar_prefetch = 0 : i64, scratch_operands = 0 : i64, tpu.core_type = #tpu.core_type<tc>} {
    %c0 = arith.constant 0 : index
    %c0_0 = arith.constant 0 : index
    %0 = vector.load %arg4[%c0, %c0_0] : memref<8x8xf32, #tpu.memory_space<vmem>>, vector<8x8xf32>
    %c0_1 = arith.constant 0 : index
    %c0_2 = arith.constant 0 : index
    %1 = vector.load %arg5[%c0_1, %c0_2] : memref<8x8xf32, #tpu.memory_space<vmem>>, vector<8x8xf32>
    %c0_3 = arith.constant 0 : index
    %c0_4 = arith.constant 0 : index
    %2 = vector.load %arg9[%c0_3, %c0_4] : memref<8x8xf32, #tpu.memory_space<vmem>>, vector<8x8xf32>
    %cst = arith.constant dense<0.000000e+00> : vector<8x8xf32>
    %3 = tpu.matmul %0, %2, %cst {dimension_numbers = #tpu.dot_dimension_numbers<[1], [0], [0], [1], [0, 0, 1, 1], [], []>} : vector<8x8xf32>, vector<8x8xf32>, vector<8x8xf32> -> vector<8x8xf32>
    %c0_5 = arith.constant 0 : index
    %c0_6 = arith.constant 0 : index
    %4 = vector.load %arg10[%c0_5, %c0_6] : memref<1x8xf32, #tpu.memory_space<vmem>>, vector<1x8xf32>
    %5 = vector.broadcast %4 : vector<1x8xf32> to vector<8x8xf32>
    %6 = arith.addf %3, %5 : vector<8x8xf32>
    %7 = arith.mulf %1, %0 : vector<8x8xf32>
    %cst_7 = arith.constant 1.000000e+00 : f32
    %8 = vector.broadcast %cst_7 : f32 to vector<8x8xf32>
    %9 = arith.subf %8, %1 : vector<8x8xf32>
    %10 = arith.mulf %9, %6 : vector<8x8xf32>
    %11 = arith.addf %7, %10 : vector<8x8xf32>
    %12 = arith.subf %0, %11 : vector<8x8xf32>
    %13 = math.absf %12 : vector<8x8xf32>
    %14 = arith.mulf %13, %1 : vector<8x8xf32>
    %15 = vector.shape_cast %14 : vector<8x8xf32> to vector<1x8x8xf32>
    %cst_8 = arith.constant dense<0.000000e+00> : vector<1xf32>
    %16 = vector.multi_reduction <add>, %15, %cst_8 [1, 2] : vector<1x8x8xf32> to vector<1xf32>
    %17 = vector.shape_cast %16 : vector<1xf32> to vector<1x1x1xf32>
    %18 = vector.extract %17[0, 0, 0] : f32 from vector<1x1x1xf32>
    %19 = vector.broadcast %18 : f32 to vector<1x1xf32>
    %c0_9 = arith.constant 0 : index
    %c0_10 = arith.constant 0 : index
    %20 = vector.load %arg6[%c0_9, %c0_10] : memref<1x1xf32, #tpu.memory_space<vmem>>, vector<1x1xf32>
    %21 = arith.mulf %19, %20 : vector<1x1xf32>
    %c0_11 = arith.constant 0 : index
    %c0_12 = arith.constant 0 : index
    %22 = vector.load %arg11[%c0_11, %c0_12] : memref<8x32xf32, #tpu.memory_space<vmem>>, vector<8x32xf32>
    %cst_13 = arith.constant dense<0.000000e+00> : vector<8x32xf32>
    %23 = tpu.matmul %11, %22, %cst_13 {dimension_numbers = #tpu.dot_dimension_numbers<[1], [0], [0], [1], [0, 0, 1, 1], [], []>} : vector<8x8xf32>, vector<8x32xf32>, vector<8x32xf32> -> vector<8x32xf32>
    %c0_14 = arith.constant 0 : index
    %c0_15 = arith.constant 0 : index
    %24 = vector.load %arg12[%c0_14, %c0_15] : memref<1x32xf32, #tpu.memory_space<vmem>>, vector<1x32xf32>
    %25 = vector.broadcast %24 : vector<1x32xf32> to vector<8x32xf32>
    %26 = arith.addf %23, %25 : vector<8x32xf32>
    %cst_16 = arith.constant 0.000000e+00 : f32
    %27 = vector.broadcast %cst_16 : f32 to vector<8x32xf32>
    %28 = arith.maximumf %26, %27 : vector<8x32xf32>
    %c0_17 = arith.constant 0 : index
    %c0_18 = arith.constant 0 : index
    %29 = vector.load %arg13[%c0_17, %c0_18] : memref<32x32xf32, #tpu.memory_space<vmem>>, vector<32x32xf32>
    %cst_19 = arith.constant dense<0.000000e+00> : vector<8x32xf32>
    %30 = tpu.matmul %28, %29, %cst_19 {dimension_numbers = #tpu.dot_dimension_numbers<[1], [0], [0], [1], [0, 0, 1, 1], [], []>} : vector<8x32xf32>, vector<32x32xf32>, vector<8x32xf32> -> vector<8x32xf32>
    %c0_20 = arith.constant 0 : index
    %c0_21 = arith.constant 0 : index
    %31 = vector.load %arg14[%c0_20, %c0_21] : memref<1x32xf32, #tpu.memory_space<vmem>>, vector<1x32xf32>
    %32 = vector.broadcast %31 : vector<1x32xf32> to vector<8x32xf32>
    %33 = arith.addf %30, %32 : vector<8x32xf32>
    %cst_22 = arith.constant 0.000000e+00 : f32
    %34 = vector.broadcast %cst_22 : f32 to vector<8x32xf32>
    %35 = arith.maximumf %33, %34 : vector<8x32xf32>
    %c0_23 = arith.constant 0 : index
    %c0_24 = arith.constant 0 : index
    %36 = vector.load %arg15[%c0_23, %c0_24] : memref<32x32xf32, #tpu.memory_space<vmem>>, vector<32x32xf32>
    %cst_25 = arith.constant dense<0.000000e+00> : vector<8x32xf32>
    %37 = tpu.matmul %35, %36, %cst_25 {dimension_numbers = #tpu.dot_dimension_numbers<[1], [0], [0], [1], [0, 0, 1, 1], [], []>} : vector<8x32xf32>, vector<32x32xf32>, vector<8x32xf32> -> vector<8x32xf32>
    %c0_26 = arith.constant 0 : index
    %c0_27 = arith.constant 0 : index
    %38 = vector.load %arg16[%c0_26, %c0_27] : memref<1x32xf32, #tpu.memory_space<vmem>>, vector<1x32xf32>
    %39 = vector.broadcast %38 : vector<1x32xf32> to vector<8x32xf32>
    %40 = arith.addf %37, %39 : vector<8x32xf32>
    %cst_28 = arith.constant 0.000000e+00 : f32
    %41 = vector.broadcast %cst_28 : f32 to vector<8x32xf32>
    %42 = arith.maximumf %40, %41 : vector<8x32xf32>
    %cst_29 = arith.constant 0.000000e+00 : f32
    %43 = vector.broadcast %cst_29 : f32 to vector<8x32xf32>
    %c0_30 = arith.constant 0 : index
    %c0_31 = arith.constant 0 : index
    %44 = vector.load %arg19[%c0_30, %c0_31] : memref<8x8xf32, #tpu.memory_space<vmem>>, vector<8x8xf32>
    %cst_32 = arith.constant dense<0.000000e+00> : vector<8x8xf32>
    %45 = tpu.matmul %11, %44, %cst_32 {dimension_numbers = #tpu.dot_dimension_numbers<[1], [0], [0], [1], [0, 0, 1, 1], [], []>} : vector<8x8xf32>, vector<8x8xf32>, vector<8x8xf32> -> vector<8x8xf32>
    %c0_33 = arith.constant 0 : index
    %c0_34 = arith.constant 0 : index
    %46 = vector.load %arg20[%c0_33, %c0_34] : memref<1x8xf32, #tpu.memory_space<vmem>>, vector<1x8xf32>
    %47 = vector.broadcast %46 : vector<1x8xf32> to vector<8x8xf32>
    %48 = arith.addf %45, %47 : vector<8x8xf32>
    %c0_35 = arith.constant 0 : index
    %c0_36 = arith.constant 0 : index
    %49 = vector.load %arg0[%c0_35, %c0_36] : memref<64x8xf32, #tpu.memory_space<vmem>>, vector<64x8xf32>
    %c0_37 = arith.constant 0 : index
    %c0_38 = arith.constant 0 : index
    %50 = vector.load %arg1[%c0_37, %c0_38] : memref<64x8xf32, #tpu.memory_space<vmem>>, vector<64x8xf32>
    %c0_39 = arith.constant 0 : index
    %c0_40 = arith.constant 0 : index
    %51 = vector.load %arg2[%c0_39, %c0_40] : memref<64x8xf32, #tpu.memory_space<vmem>>, vector<64x8xf32>
    %c0_41 = arith.constant 0 : index
    %c0_42 = arith.constant 0 : index
    %52 = vector.load %arg3[%c0_41, %c0_42] : memref<64x8xf32, #tpu.memory_space<vmem>>, vector<64x8xf32>
    %c0_43 = arith.constant 0 : index
    %c0_44 = arith.constant 0 : index
    %53 = vector.load %arg22[%c0_43, %c0_44] : memref<32x136xbf16, #tpu.memory_space<vmem>>, vector<32x136xbf16>
    %c0_45 = arith.constant 0 : index
    %c0_46 = arith.constant 0 : index
    %54 = vector.load %arg23[%c0_45, %c0_46] : memref<8x128xbf16, #tpu.memory_space<vmem>>, vector<8x128xbf16>
    %55 = arith.truncf %52 : vector<64x8xf32> to vector<64x8xbf16>
    %c0_47 = arith.constant 0 : index
    %c0_48 = arith.constant 0 : index
    %56 = vector.load %arg17[%c0_47, %c0_48] : memref<8x32xbf16, #tpu.memory_space<vmem>>, vector<8x32xbf16>
    %cst_49 = arith.constant dense<0.000000e+00> : vector<64x32xf32>
    %57 = tpu.matmul %55, %56, %cst_49 {dimension_numbers = #tpu.dot_dimension_numbers<[1], [0], [0], [1], [0, 0, 1, 1], [], []>} : vector<64x8xbf16>, vector<8x32xbf16>, vector<64x32xf32> -> vector<64x32xf32>
    %c0_50 = arith.constant 0 : index
    %c0_51 = arith.constant 0 : index
    %58 = vector.load %arg18[%c0_50, %c0_51] : memref<1x32xf32, #tpu.memory_space<vmem>>, vector<1x32xf32>
    %59 = vector.broadcast %58 : vector<1x32xf32> to vector<64x32xf32>
    %60 = arith.addf %57, %59 : vector<64x32xf32>
    %cst_52 = arith.constant 0.000000e+00 : f32
    %61 = vector.broadcast %cst_52 : f32 to vector<64x32xf32>
    %62 = arith.maximumf %60, %61 : vector<64x32xf32>
    %cst_53 = arith.constant 0.000000e+00 : f32
    %63 = vector.broadcast %cst_53 : f32 to vector<64x32xf32>
    %64 = arith.subf %63, %62 : vector<64x32xf32>
    %65 = math.exp %64 : vector<64x32xf32>
    %66 = arith.truncf %49 : vector<64x8xf32> to vector<64x8xbf16>
    %c0_54 = arith.constant 0 : index
    %c0_55 = arith.constant 0 : index
    %67 = vector.load %arg21[%c0_54, %c0_55] : memref<8x8xbf16, #tpu.memory_space<vmem>>, vector<8x8xbf16>
    %cst_56 = arith.constant dense<0.000000e+00> : vector<64x8xf32>
    %68 = tpu.matmul %66, %67, %cst_56 {dimension_numbers = #tpu.dot_dimension_numbers<[1], [0], [0], [1], [0, 0, 1, 1], [], []>} : vector<64x8xbf16>, vector<8x8xbf16>, vector<64x8xf32> -> vector<64x8xf32>
    %69 = arith.truncf %50 : vector<64x8xf32> to vector<64x8xbf16>
    %c0_57 = arith.constant 0 : index
    %c0_58 = arith.constant 0 : index
    %70 = vector.load %arg24[%c0_57, %c0_58] : memref<8x128xbf16, #tpu.memory_space<vmem>>, vector<8x128xbf16>
    %cst_59 = arith.constant dense<0.000000e+00> : vector<64x128xf32>
    %71 = tpu.matmul %69, %70, %cst_59 {dimension_numbers = #tpu.dot_dimension_numbers<[1], [0], [0], [1], [0, 0, 1, 1], [], []>} : vector<64x8xbf16>, vector<8x128xbf16>, vector<64x128xf32> -> vector<64x128xf32>
    %c0_60 = arith.constant 0 : index
    %c0_61 = arith.constant 0 : index
    %72 = vector.load %arg25[%c0_60, %c0_61] : memref<1x128xf32, #tpu.memory_space<vmem>>, vector<1x128xf32>
    %73 = vector.broadcast %72 : vector<1x128xf32> to vector<64x128xf32>
    %74 = arith.addf %71, %73 : vector<64x128xf32>
    %cst_62 = arith.constant 0.000000e+00 : f32
    %75 = vector.broadcast %cst_62 : f32 to vector<8x8xf32>
    %76 = vector.extract_strided_slice %49 {offsets = [0, 0], sizes = [8, 8], strides = [1, 1]} : vector<64x8xf32> to vector<8x8xf32>
    %77 = vector.extract_strided_slice %50 {offsets = [0, 0], sizes = [8, 8], strides = [1, 1]} : vector<64x8xf32> to vector<8x8xf32>
    %78 = vector.extract_strided_slice %65 {offsets = [0, 0], sizes = [8, 32], strides = [1, 1]} : vector<64x32xf32> to vector<8x32xf32>
    %79 = arith.mulf %42, %78 : vector<8x32xf32>
    %80 = arith.truncf %79 : vector<8x32xf32> to vector<8x32xbf16>
    %cst_63 = arith.constant dense<0.000000e+00> : vector<8x136xf32>
    %81 = tpu.matmul %80, %53, %cst_63 {dimension_numbers = #tpu.dot_dimension_numbers<[1], [0], [0], [1], [0, 0, 1, 1], [], []>} : vector<8x32xbf16>, vector<32x136xbf16>, vector<8x136xf32> -> vector<8x136xf32>
    %82 = vector.extract_strided_slice %81 {offsets = [0, 0], sizes = [8, 128], strides = [1, 1]} : vector<8x136xf32> to vector<8x128xf32>
    %83 = vector.extract_strided_slice %81 {offsets = [0, 128], sizes = [8, 8], strides = [1, 1]} : vector<8x136xf32> to vector<8x8xf32>
    %84 = vector.extract_strided_slice %68 {offsets = [0, 0], sizes = [8, 8], strides = [1, 1]} : vector<64x8xf32> to vector<8x8xf32>
    %85 = arith.addf %83, %84 : vector<8x8xf32>
    %86 = arith.addf %85, %48 : vector<8x8xf32>
    %87 = arith.subf %76, %86 : vector<8x8xf32>
    %88 = math.absf %87 : vector<8x8xf32>
    %89 = vector.extract_strided_slice %51 {offsets = [0, 0], sizes = [8, 8], strides = [1, 1]} : vector<64x8xf32> to vector<8x8xf32>
    %90 = arith.mulf %88, %89 : vector<8x8xf32>
    %91 = arith.addf %75, %90 : vector<8x8xf32>
    %92 = arith.mulf %77, %76 : vector<8x8xf32>
    %cst_64 = arith.constant 1.000000e+00 : f32
    %93 = vector.broadcast %cst_64 : f32 to vector<8x8xf32>
    %94 = arith.subf %93, %77 : vector<8x8xf32>
    %95 = arith.mulf %94, %86 : vector<8x8xf32>
    %96 = arith.addf %92, %95 : vector<8x8xf32>
    %97 = arith.truncf %96 : vector<8x8xf32> to vector<8x8xbf16>
    %cst_65 = arith.constant dense<0.000000e+00> : vector<8x128xf32>
    %98 = tpu.matmul %97, %54, %cst_65 {dimension_numbers = #tpu.dot_dimension_numbers<[1], [0], [0], [1], [0, 0, 1, 1], [], []>} : vector<8x8xbf16>, vector<8x128xbf16>, vector<8x128xf32> -> vector<8x128xf32>
    %99 = vector.extract_strided_slice %74 {offsets = [0, 0], sizes = [8, 128], strides = [1, 1]} : vector<64x128xf32> to vector<8x128xf32>
    %100 = arith.addf %98, %99 : vector<8x128xf32>
    %101 = arith.addf %100, %82 : vector<8x128xf32>
    %102 = arith.negf %101 : vector<8x128xf32>
    %103 = math.exp %102 : vector<8x128xf32>
    %cst_66 = arith.constant 1.000000e+00 : f32
    %104 = vector.broadcast %cst_66 : f32 to vector<8x128xf32>
    %105 = arith.addf %104, %103 : vector<8x128xf32>
    %106 = arith.divf %104, %105 : vector<8x128xf32>
    %107 = vector.extract_strided_slice %106 {offsets = [0, 0], sizes = [8, 32], strides = [1, 1]} : vector<8x128xf32> to vector<8x32xf32>
    %108 = vector.extract_strided_slice %106 {offsets = [0, 32], sizes = [8, 32], strides = [1, 1]} : vector<8x128xf32> to vector<8x32xf32>
    %109 = vector.extract_strided_slice %106 {offsets = [0, 64], sizes = [8, 32], strides = [1, 1]} : vector<8x128xf32> to vector<8x32xf32>
    %110 = vector.extract_strided_slice %101 {offsets = [0, 96], sizes = [8, 32], strides = [1, 1]} : vector<8x128xf32> to vector<8x32xf32>
    %111 = math.tanh %110 : vector<8x32xf32>
    %112 = arith.mulf %108, %43 : vector<8x32xf32>
    %113 = arith.mulf %107, %111 : vector<8x32xf32>
    %114 = arith.addf %112, %113 : vector<8x32xf32>
    %115 = math.tanh %114 : vector<8x32xf32>
    %116 = arith.mulf %109, %115 : vector<8x32xf32>
    %117 = vector.extract_strided_slice %49 {offsets = [8, 0], sizes = [8, 8], strides = [1, 1]} : vector<64x8xf32> to vector<8x8xf32>
    %118 = vector.extract_strided_slice %50 {offsets = [8, 0], sizes = [8, 8], strides = [1, 1]} : vector<64x8xf32> to vector<8x8xf32>
    %119 = vector.extract_strided_slice %65 {offsets = [8, 0], sizes = [8, 32], strides = [1, 1]} : vector<64x32xf32> to vector<8x32xf32>
    %120 = arith.mulf %116, %119 : vector<8x32xf32>
    %121 = arith.truncf %120 : vector<8x32xf32> to vector<8x32xbf16>
    %cst_67 = arith.constant dense<0.000000e+00> : vector<8x136xf32>
    %122 = tpu.matmul %121, %53, %cst_67 {dimension_numbers = #tpu.dot_dimension_numbers<[1], [0], [0], [1], [0, 0, 1, 1], [], []>} : vector<8x32xbf16>, vector<32x136xbf16>, vector<8x136xf32> -> vector<8x136xf32>
    %123 = vector.extract_strided_slice %122 {offsets = [0, 0], sizes = [8, 128], strides = [1, 1]} : vector<8x136xf32> to vector<8x128xf32>
    %124 = vector.extract_strided_slice %122 {offsets = [0, 128], sizes = [8, 8], strides = [1, 1]} : vector<8x136xf32> to vector<8x8xf32>
    %125 = vector.extract_strided_slice %68 {offsets = [8, 0], sizes = [8, 8], strides = [1, 1]} : vector<64x8xf32> to vector<8x8xf32>
    %126 = arith.addf %124, %125 : vector<8x8xf32>
    %127 = arith.addf %126, %48 : vector<8x8xf32>
    %128 = arith.subf %117, %127 : vector<8x8xf32>
    %129 = math.absf %128 : vector<8x8xf32>
    %130 = vector.extract_strided_slice %51 {offsets = [8, 0], sizes = [8, 8], strides = [1, 1]} : vector<64x8xf32> to vector<8x8xf32>
    %131 = arith.mulf %129, %130 : vector<8x8xf32>
    %132 = arith.addf %91, %131 : vector<8x8xf32>
    %133 = arith.mulf %118, %117 : vector<8x8xf32>
    %cst_68 = arith.constant 1.000000e+00 : f32
    %134 = vector.broadcast %cst_68 : f32 to vector<8x8xf32>
    %135 = arith.subf %134, %118 : vector<8x8xf32>
    %136 = arith.mulf %135, %127 : vector<8x8xf32>
    %137 = arith.addf %133, %136 : vector<8x8xf32>
    %138 = arith.truncf %137 : vector<8x8xf32> to vector<8x8xbf16>
    %cst_69 = arith.constant dense<0.000000e+00> : vector<8x128xf32>
    %139 = tpu.matmul %138, %54, %cst_69 {dimension_numbers = #tpu.dot_dimension_numbers<[1], [0], [0], [1], [0, 0, 1, 1], [], []>} : vector<8x8xbf16>, vector<8x128xbf16>, vector<8x128xf32> -> vector<8x128xf32>
    %140 = vector.extract_strided_slice %74 {offsets = [8, 0], sizes = [8, 128], strides = [1, 1]} : vector<64x128xf32> to vector<8x128xf32>
    %141 = arith.addf %139, %140 : vector<8x128xf32>
    %142 = arith.addf %141, %123 : vector<8x128xf32>
    %143 = arith.negf %142 : vector<8x128xf32>
    %144 = math.exp %143 : vector<8x128xf32>
    %cst_70 = arith.constant 1.000000e+00 : f32
    %145 = vector.broadcast %cst_70 : f32 to vector<8x128xf32>
    %146 = arith.addf %145, %144 : vector<8x128xf32>
    %147 = arith.divf %145, %146 : vector<8x128xf32>
    %148 = vector.extract_strided_slice %147 {offsets = [0, 0], sizes = [8, 32], strides = [1, 1]} : vector<8x128xf32> to vector<8x32xf32>
    %149 = vector.extract_strided_slice %147 {offsets = [0, 32], sizes = [8, 32], strides = [1, 1]} : vector<8x128xf32> to vector<8x32xf32>
    %150 = vector.extract_strided_slice %147 {offsets = [0, 64], sizes = [8, 32], strides = [1, 1]} : vector<8x128xf32> to vector<8x32xf32>
    %151 = vector.extract_strided_slice %142 {offsets = [0, 96], sizes = [8, 32], strides = [1, 1]} : vector<8x128xf32> to vector<8x32xf32>
    %152 = math.tanh %151 : vector<8x32xf32>
    %153 = arith.mulf %149, %114 : vector<8x32xf32>
    %154 = arith.mulf %148, %152 : vector<8x32xf32>
    %155 = arith.addf %153, %154 : vector<8x32xf32>
    %156 = math.tanh %155 : vector<8x32xf32>
    %157 = arith.mulf %150, %156 : vector<8x32xf32>
    %158 = vector.extract_strided_slice %49 {offsets = [16, 0], sizes = [8, 8], strides = [1, 1]} : vector<64x8xf32> to vector<8x8xf32>
    %159 = vector.extract_strided_slice %50 {offsets = [16, 0], sizes = [8, 8], strides = [1, 1]} : vector<64x8xf32> to vector<8x8xf32>
    %160 = vector.extract_strided_slice %65 {offsets = [16, 0], sizes = [8, 32], strides = [1, 1]} : vector<64x32xf32> to vector<8x32xf32>
    %161 = arith.mulf %157, %160 : vector<8x32xf32>
    %162 = arith.truncf %161 : vector<8x32xf32> to vector<8x32xbf16>
    %cst_71 = arith.constant dense<0.000000e+00> : vector<8x136xf32>
    %163 = tpu.matmul %162, %53, %cst_71 {dimension_numbers = #tpu.dot_dimension_numbers<[1], [0], [0], [1], [0, 0, 1, 1], [], []>} : vector<8x32xbf16>, vector<32x136xbf16>, vector<8x136xf32> -> vector<8x136xf32>
    %164 = vector.extract_strided_slice %163 {offsets = [0, 0], sizes = [8, 128], strides = [1, 1]} : vector<8x136xf32> to vector<8x128xf32>
    %165 = vector.extract_strided_slice %163 {offsets = [0, 128], sizes = [8, 8], strides = [1, 1]} : vector<8x136xf32> to vector<8x8xf32>
    %166 = vector.extract_strided_slice %68 {offsets = [16, 0], sizes = [8, 8], strides = [1, 1]} : vector<64x8xf32> to vector<8x8xf32>
    %167 = arith.addf %165, %166 : vector<8x8xf32>
    %168 = arith.addf %167, %48 : vector<8x8xf32>
    %169 = arith.subf %158, %168 : vector<8x8xf32>
    %170 = math.absf %169 : vector<8x8xf32>
    %171 = vector.extract_strided_slice %51 {offsets = [16, 0], sizes = [8, 8], strides = [1, 1]} : vector<64x8xf32> to vector<8x8xf32>
    %172 = arith.mulf %170, %171 : vector<8x8xf32>
    %173 = arith.addf %132, %172 : vector<8x8xf32>
    %174 = arith.mulf %159, %158 : vector<8x8xf32>
    %cst_72 = arith.constant 1.000000e+00 : f32
    %175 = vector.broadcast %cst_72 : f32 to vector<8x8xf32>
    %176 = arith.subf %175, %159 : vector<8x8xf32>
    %177 = arith.mulf %176, %168 : vector<8x8xf32>
    %178 = arith.addf %174, %177 : vector<8x8xf32>
    %179 = arith.truncf %178 : vector<8x8xf32> to vector<8x8xbf16>
    %cst_73 = arith.constant dense<0.000000e+00> : vector<8x128xf32>
    %180 = tpu.matmul %179, %54, %cst_73 {dimension_numbers = #tpu.dot_dimension_numbers<[1], [0], [0], [1], [0, 0, 1, 1], [], []>} : vector<8x8xbf16>, vector<8x128xbf16>, vector<8x128xf32> -> vector<8x128xf32>
    %181 = vector.extract_strided_slice %74 {offsets = [16, 0], sizes = [8, 128], strides = [1, 1]} : vector<64x128xf32> to vector<8x128xf32>
    %182 = arith.addf %180, %181 : vector<8x128xf32>
    %183 = arith.addf %182, %164 : vector<8x128xf32>
    %184 = arith.negf %183 : vector<8x128xf32>
    %185 = math.exp %184 : vector<8x128xf32>
    %cst_74 = arith.constant 1.000000e+00 : f32
    %186 = vector.broadcast %cst_74 : f32 to vector<8x128xf32>
    %187 = arith.addf %186, %185 : vector<8x128xf32>
    %188 = arith.divf %186, %187 : vector<8x128xf32>
    %189 = vector.extract_strided_slice %188 {offsets = [0, 0], sizes = [8, 32], strides = [1, 1]} : vector<8x128xf32> to vector<8x32xf32>
    %190 = vector.extract_strided_slice %188 {offsets = [0, 32], sizes = [8, 32], strides = [1, 1]} : vector<8x128xf32> to vector<8x32xf32>
    %191 = vector.extract_strided_slice %188 {offsets = [0, 64], sizes = [8, 32], strides = [1, 1]} : vector<8x128xf32> to vector<8x32xf32>
    %192 = vector.extract_strided_slice %183 {offsets = [0, 96], sizes = [8, 32], strides = [1, 1]} : vector<8x128xf32> to vector<8x32xf32>
    %193 = math.tanh %192 : vector<8x32xf32>
    %194 = arith.mulf %190, %155 : vector<8x32xf32>
    %195 = arith.mulf %189, %193 : vector<8x32xf32>
    %196 = arith.addf %194, %195 : vector<8x32xf32>
    %197 = math.tanh %196 : vector<8x32xf32>
    %198 = arith.mulf %191, %197 : vector<8x32xf32>
    %199 = vector.extract_strided_slice %49 {offsets = [24, 0], sizes = [8, 8], strides = [1, 1]} : vector<64x8xf32> to vector<8x8xf32>
    %200 = vector.extract_strided_slice %50 {offsets = [24, 0], sizes = [8, 8], strides = [1, 1]} : vector<64x8xf32> to vector<8x8xf32>
    %201 = vector.extract_strided_slice %65 {offsets = [24, 0], sizes = [8, 32], strides = [1, 1]} : vector<64x32xf32> to vector<8x32xf32>
    %202 = arith.mulf %198, %201 : vector<8x32xf32>
    %203 = arith.truncf %202 : vector<8x32xf32> to vector<8x32xbf16>
    %cst_75 = arith.constant dense<0.000000e+00> : vector<8x136xf32>
    %204 = tpu.matmul %203, %53, %cst_75 {dimension_numbers = #tpu.dot_dimension_numbers<[1], [0], [0], [1], [0, 0, 1, 1], [], []>} : vector<8x32xbf16>, vector<32x136xbf16>, vector<8x136xf32> -> vector<8x136xf32>
    %205 = vector.extract_strided_slice %204 {offsets = [0, 0], sizes = [8, 128], strides = [1, 1]} : vector<8x136xf32> to vector<8x128xf32>
    %206 = vector.extract_strided_slice %204 {offsets = [0, 128], sizes = [8, 8], strides = [1, 1]} : vector<8x136xf32> to vector<8x8xf32>
    %207 = vector.extract_strided_slice %68 {offsets = [24, 0], sizes = [8, 8], strides = [1, 1]} : vector<64x8xf32> to vector<8x8xf32>
    %208 = arith.addf %206, %207 : vector<8x8xf32>
    %209 = arith.addf %208, %48 : vector<8x8xf32>
    %210 = arith.subf %199, %209 : vector<8x8xf32>
    %211 = math.absf %210 : vector<8x8xf32>
    %212 = vector.extract_strided_slice %51 {offsets = [24, 0], sizes = [8, 8], strides = [1, 1]} : vector<64x8xf32> to vector<8x8xf32>
    %213 = arith.mulf %211, %212 : vector<8x8xf32>
    %214 = arith.addf %173, %213 : vector<8x8xf32>
    %215 = arith.mulf %200, %199 : vector<8x8xf32>
    %cst_76 = arith.constant 1.000000e+00 : f32
    %216 = vector.broadcast %cst_76 : f32 to vector<8x8xf32>
    %217 = arith.subf %216, %200 : vector<8x8xf32>
    %218 = arith.mulf %217, %209 : vector<8x8xf32>
    %219 = arith.addf %215, %218 : vector<8x8xf32>
    %220 = arith.truncf %219 : vector<8x8xf32> to vector<8x8xbf16>
    %cst_77 = arith.constant dense<0.000000e+00> : vector<8x128xf32>
    %221 = tpu.matmul %220, %54, %cst_77 {dimension_numbers = #tpu.dot_dimension_numbers<[1], [0], [0], [1], [0, 0, 1, 1], [], []>} : vector<8x8xbf16>, vector<8x128xbf16>, vector<8x128xf32> -> vector<8x128xf32>
    %222 = vector.extract_strided_slice %74 {offsets = [24, 0], sizes = [8, 128], strides = [1, 1]} : vector<64x128xf32> to vector<8x128xf32>
    %223 = arith.addf %221, %222 : vector<8x128xf32>
    %224 = arith.addf %223, %205 : vector<8x128xf32>
    %225 = arith.negf %224 : vector<8x128xf32>
    %226 = math.exp %225 : vector<8x128xf32>
    %cst_78 = arith.constant 1.000000e+00 : f32
    %227 = vector.broadcast %cst_78 : f32 to vector<8x128xf32>
    %228 = arith.addf %227, %226 : vector<8x128xf32>
    %229 = arith.divf %227, %228 : vector<8x128xf32>
    %230 = vector.extract_strided_slice %229 {offsets = [0, 0], sizes = [8, 32], strides = [1, 1]} : vector<8x128xf32> to vector<8x32xf32>
    %231 = vector.extract_strided_slice %229 {offsets = [0, 32], sizes = [8, 32], strides = [1, 1]} : vector<8x128xf32> to vector<8x32xf32>
    %232 = vector.extract_strided_slice %229 {offsets = [0, 64], sizes = [8, 32], strides = [1, 1]} : vector<8x128xf32> to vector<8x32xf32>
    %233 = vector.extract_strided_slice %224 {offsets = [0, 96], sizes = [8, 32], strides = [1, 1]} : vector<8x128xf32> to vector<8x32xf32>
    %234 = math.tanh %233 : vector<8x32xf32>
    %235 = arith.mulf %231, %196 : vector<8x32xf32>
    %236 = arith.mulf %230, %234 : vector<8x32xf32>
    %237 = arith.addf %235, %236 : vector<8x32xf32>
    %238 = math.tanh %237 : vector<8x32xf32>
    %239 = arith.mulf %232, %238 : vector<8x32xf32>
    %240 = vector.extract_strided_slice %49 {offsets = [32, 0], sizes = [8, 8], strides = [1, 1]} : vector<64x8xf32> to vector<8x8xf32>
    %241 = vector.extract_strided_slice %50 {offsets = [32, 0], sizes = [8, 8], strides = [1, 1]} : vector<64x8xf32> to vector<8x8xf32>
    %242 = vector.extract_strided_slice %65 {offsets = [32, 0], sizes = [8, 32], strides = [1, 1]} : vector<64x32xf32> to vector<8x32xf32>
    %243 = arith.mulf %239, %242 : vector<8x32xf32>
    %244 = arith.truncf %243 : vector<8x32xf32> to vector<8x32xbf16>
    %cst_79 = arith.constant dense<0.000000e+00> : vector<8x136xf32>
    %245 = tpu.matmul %244, %53, %cst_79 {dimension_numbers = #tpu.dot_dimension_numbers<[1], [0], [0], [1], [0, 0, 1, 1], [], []>} : vector<8x32xbf16>, vector<32x136xbf16>, vector<8x136xf32> -> vector<8x136xf32>
    %246 = vector.extract_strided_slice %245 {offsets = [0, 0], sizes = [8, 128], strides = [1, 1]} : vector<8x136xf32> to vector<8x128xf32>
    %247 = vector.extract_strided_slice %245 {offsets = [0, 128], sizes = [8, 8], strides = [1, 1]} : vector<8x136xf32> to vector<8x8xf32>
    %248 = vector.extract_strided_slice %68 {offsets = [32, 0], sizes = [8, 8], strides = [1, 1]} : vector<64x8xf32> to vector<8x8xf32>
    %249 = arith.addf %247, %248 : vector<8x8xf32>
    %250 = arith.addf %249, %48 : vector<8x8xf32>
    %251 = arith.subf %240, %250 : vector<8x8xf32>
    %252 = math.absf %251 : vector<8x8xf32>
    %253 = vector.extract_strided_slice %51 {offsets = [32, 0], sizes = [8, 8], strides = [1, 1]} : vector<64x8xf32> to vector<8x8xf32>
    %254 = arith.mulf %252, %253 : vector<8x8xf32>
    %255 = arith.addf %214, %254 : vector<8x8xf32>
    %256 = arith.mulf %241, %240 : vector<8x8xf32>
    %cst_80 = arith.constant 1.000000e+00 : f32
    %257 = vector.broadcast %cst_80 : f32 to vector<8x8xf32>
    %258 = arith.subf %257, %241 : vector<8x8xf32>
    %259 = arith.mulf %258, %250 : vector<8x8xf32>
    %260 = arith.addf %256, %259 : vector<8x8xf32>
    %261 = arith.truncf %260 : vector<8x8xf32> to vector<8x8xbf16>
    %cst_81 = arith.constant dense<0.000000e+00> : vector<8x128xf32>
    %262 = tpu.matmul %261, %54, %cst_81 {dimension_numbers = #tpu.dot_dimension_numbers<[1], [0], [0], [1], [0, 0, 1, 1], [], []>} : vector<8x8xbf16>, vector<8x128xbf16>, vector<8x128xf32> -> vector<8x128xf32>
    %263 = vector.extract_strided_slice %74 {offsets = [32, 0], sizes = [8, 128], strides = [1, 1]} : vector<64x128xf32> to vector<8x128xf32>
    %264 = arith.addf %262, %263 : vector<8x128xf32>
    %265 = arith.addf %264, %246 : vector<8x128xf32>
    %266 = arith.negf %265 : vector<8x128xf32>
    %267 = math.exp %266 : vector<8x128xf32>
    %cst_82 = arith.constant 1.000000e+00 : f32
    %268 = vector.broadcast %cst_82 : f32 to vector<8x128xf32>
    %269 = arith.addf %268, %267 : vector<8x128xf32>
    %270 = arith.divf %268, %269 : vector<8x128xf32>
    %271 = vector.extract_strided_slice %270 {offsets = [0, 0], sizes = [8, 32], strides = [1, 1]} : vector<8x128xf32> to vector<8x32xf32>
    %272 = vector.extract_strided_slice %270 {offsets = [0, 32], sizes = [8, 32], strides = [1, 1]} : vector<8x128xf32> to vector<8x32xf32>
    %273 = vector.extract_strided_slice %270 {offsets = [0, 64], sizes = [8, 32], strides = [1, 1]} : vector<8x128xf32> to vector<8x32xf32>
    %274 = vector.extract_strided_slice %265 {offsets = [0, 96], sizes = [8, 32], strides = [1, 1]} : vector<8x128xf32> to vector<8x32xf32>
    %275 = math.tanh %274 : vector<8x32xf32>
    %276 = arith.mulf %272, %237 : vector<8x32xf32>
    %277 = arith.mulf %271, %275 : vector<8x32xf32>
    %278 = arith.addf %276, %277 : vector<8x32xf32>
    %279 = math.tanh %278 : vector<8x32xf32>
    %280 = arith.mulf %273, %279 : vector<8x32xf32>
    %281 = vector.extract_strided_slice %49 {offsets = [40, 0], sizes = [8, 8], strides = [1, 1]} : vector<64x8xf32> to vector<8x8xf32>
    %282 = vector.extract_strided_slice %50 {offsets = [40, 0], sizes = [8, 8], strides = [1, 1]} : vector<64x8xf32> to vector<8x8xf32>
    %283 = vector.extract_strided_slice %65 {offsets = [40, 0], sizes = [8, 32], strides = [1, 1]} : vector<64x32xf32> to vector<8x32xf32>
    %284 = arith.mulf %280, %283 : vector<8x32xf32>
    %285 = arith.truncf %284 : vector<8x32xf32> to vector<8x32xbf16>
    %cst_83 = arith.constant dense<0.000000e+00> : vector<8x136xf32>
    %286 = tpu.matmul %285, %53, %cst_83 {dimension_numbers = #tpu.dot_dimension_numbers<[1], [0], [0], [1], [0, 0, 1, 1], [], []>} : vector<8x32xbf16>, vector<32x136xbf16>, vector<8x136xf32> -> vector<8x136xf32>
    %287 = vector.extract_strided_slice %286 {offsets = [0, 0], sizes = [8, 128], strides = [1, 1]} : vector<8x136xf32> to vector<8x128xf32>
    %288 = vector.extract_strided_slice %286 {offsets = [0, 128], sizes = [8, 8], strides = [1, 1]} : vector<8x136xf32> to vector<8x8xf32>
    %289 = vector.extract_strided_slice %68 {offsets = [40, 0], sizes = [8, 8], strides = [1, 1]} : vector<64x8xf32> to vector<8x8xf32>
    %290 = arith.addf %288, %289 : vector<8x8xf32>
    %291 = arith.addf %290, %48 : vector<8x8xf32>
    %292 = arith.subf %281, %291 : vector<8x8xf32>
    %293 = math.absf %292 : vector<8x8xf32>
    %294 = vector.extract_strided_slice %51 {offsets = [40, 0], sizes = [8, 8], strides = [1, 1]} : vector<64x8xf32> to vector<8x8xf32>
    %295 = arith.mulf %293, %294 : vector<8x8xf32>
    %296 = arith.addf %255, %295 : vector<8x8xf32>
    %297 = arith.mulf %282, %281 : vector<8x8xf32>
    %cst_84 = arith.constant 1.000000e+00 : f32
    %298 = vector.broadcast %cst_84 : f32 to vector<8x8xf32>
    %299 = arith.subf %298, %282 : vector<8x8xf32>
    %300 = arith.mulf %299, %291 : vector<8x8xf32>
    %301 = arith.addf %297, %300 : vector<8x8xf32>
    %302 = arith.truncf %301 : vector<8x8xf32> to vector<8x8xbf16>
    %cst_85 = arith.constant dense<0.000000e+00> : vector<8x128xf32>
    %303 = tpu.matmul %302, %54, %cst_85 {dimension_numbers = #tpu.dot_dimension_numbers<[1], [0], [0], [1], [0, 0, 1, 1], [], []>} : vector<8x8xbf16>, vector<8x128xbf16>, vector<8x128xf32> -> vector<8x128xf32>
    %304 = vector.extract_strided_slice %74 {offsets = [40, 0], sizes = [8, 128], strides = [1, 1]} : vector<64x128xf32> to vector<8x128xf32>
    %305 = arith.addf %303, %304 : vector<8x128xf32>
    %306 = arith.addf %305, %287 : vector<8x128xf32>
    %307 = arith.negf %306 : vector<8x128xf32>
    %308 = math.exp %307 : vector<8x128xf32>
    %cst_86 = arith.constant 1.000000e+00 : f32
    %309 = vector.broadcast %cst_86 : f32 to vector<8x128xf32>
    %310 = arith.addf %309, %308 : vector<8x128xf32>
    %311 = arith.divf %309, %310 : vector<8x128xf32>
    %312 = vector.extract_strided_slice %311 {offsets = [0, 0], sizes = [8, 32], strides = [1, 1]} : vector<8x128xf32> to vector<8x32xf32>
    %313 = vector.extract_strided_slice %311 {offsets = [0, 32], sizes = [8, 32], strides = [1, 1]} : vector<8x128xf32> to vector<8x32xf32>
    %314 = vector.extract_strided_slice %311 {offsets = [0, 64], sizes = [8, 32], strides = [1, 1]} : vector<8x128xf32> to vector<8x32xf32>
    %315 = vector.extract_strided_slice %306 {offsets = [0, 96], sizes = [8, 32], strides = [1, 1]} : vector<8x128xf32> to vector<8x32xf32>
    %316 = math.tanh %315 : vector<8x32xf32>
    %317 = arith.mulf %313, %278 : vector<8x32xf32>
    %318 = arith.mulf %312, %316 : vector<8x32xf32>
    %319 = arith.addf %317, %318 : vector<8x32xf32>
    %320 = math.tanh %319 : vector<8x32xf32>
    %321 = arith.mulf %314, %320 : vector<8x32xf32>
    %322 = vector.extract_strided_slice %49 {offsets = [48, 0], sizes = [8, 8], strides = [1, 1]} : vector<64x8xf32> to vector<8x8xf32>
    %323 = vector.extract_strided_slice %50 {offsets = [48, 0], sizes = [8, 8], strides = [1, 1]} : vector<64x8xf32> to vector<8x8xf32>
    %324 = vector.extract_strided_slice %65 {offsets = [48, 0], sizes = [8, 32], strides = [1, 1]} : vector<64x32xf32> to vector<8x32xf32>
    %325 = arith.mulf %321, %324 : vector<8x32xf32>
    %326 = arith.truncf %325 : vector<8x32xf32> to vector<8x32xbf16>
    %cst_87 = arith.constant dense<0.000000e+00> : vector<8x136xf32>
    %327 = tpu.matmul %326, %53, %cst_87 {dimension_numbers = #tpu.dot_dimension_numbers<[1], [0], [0], [1], [0, 0, 1, 1], [], []>} : vector<8x32xbf16>, vector<32x136xbf16>, vector<8x136xf32> -> vector<8x136xf32>
    %328 = vector.extract_strided_slice %327 {offsets = [0, 0], sizes = [8, 128], strides = [1, 1]} : vector<8x136xf32> to vector<8x128xf32>
    %329 = vector.extract_strided_slice %327 {offsets = [0, 128], sizes = [8, 8], strides = [1, 1]} : vector<8x136xf32> to vector<8x8xf32>
    %330 = vector.extract_strided_slice %68 {offsets = [48, 0], sizes = [8, 8], strides = [1, 1]} : vector<64x8xf32> to vector<8x8xf32>
    %331 = arith.addf %329, %330 : vector<8x8xf32>
    %332 = arith.addf %331, %48 : vector<8x8xf32>
    %333 = arith.subf %322, %332 : vector<8x8xf32>
    %334 = math.absf %333 : vector<8x8xf32>
    %335 = vector.extract_strided_slice %51 {offsets = [48, 0], sizes = [8, 8], strides = [1, 1]} : vector<64x8xf32> to vector<8x8xf32>
    %336 = arith.mulf %334, %335 : vector<8x8xf32>
    %337 = arith.addf %296, %336 : vector<8x8xf32>
    %338 = arith.mulf %323, %322 : vector<8x8xf32>
    %cst_88 = arith.constant 1.000000e+00 : f32
    %339 = vector.broadcast %cst_88 : f32 to vector<8x8xf32>
    %340 = arith.subf %339, %323 : vector<8x8xf32>
    %341 = arith.mulf %340, %332 : vector<8x8xf32>
    %342 = arith.addf %338, %341 : vector<8x8xf32>
    %343 = arith.truncf %342 : vector<8x8xf32> to vector<8x8xbf16>
    %cst_89 = arith.constant dense<0.000000e+00> : vector<8x128xf32>
    %344 = tpu.matmul %343, %54, %cst_89 {dimension_numbers = #tpu.dot_dimension_numbers<[1], [0], [0], [1], [0, 0, 1, 1], [], []>} : vector<8x8xbf16>, vector<8x128xbf16>, vector<8x128xf32> -> vector<8x128xf32>
    %345 = vector.extract_strided_slice %74 {offsets = [48, 0], sizes = [8, 128], strides = [1, 1]} : vector<64x128xf32> to vector<8x128xf32>
    %346 = arith.addf %344, %345 : vector<8x128xf32>
    %347 = arith.addf %346, %328 : vector<8x128xf32>
    %348 = arith.negf %347 : vector<8x128xf32>
    %349 = math.exp %348 : vector<8x128xf32>
    %cst_90 = arith.constant 1.000000e+00 : f32
    %350 = vector.broadcast %cst_90 : f32 to vector<8x128xf32>
    %351 = arith.addf %350, %349 : vector<8x128xf32>
    %352 = arith.divf %350, %351 : vector<8x128xf32>
    %353 = vector.extract_strided_slice %352 {offsets = [0, 0], sizes = [8, 32], strides = [1, 1]} : vector<8x128xf32> to vector<8x32xf32>
    %354 = vector.extract_strided_slice %352 {offsets = [0, 32], sizes = [8, 32], strides = [1, 1]} : vector<8x128xf32> to vector<8x32xf32>
    %355 = vector.extract_strided_slice %352 {offsets = [0, 64], sizes = [8, 32], strides = [1, 1]} : vector<8x128xf32> to vector<8x32xf32>
    %356 = vector.extract_strided_slice %347 {offsets = [0, 96], sizes = [8, 32], strides = [1, 1]} : vector<8x128xf32> to vector<8x32xf32>
    %357 = math.tanh %356 : vector<8x32xf32>
    %358 = arith.mulf %354, %319 : vector<8x32xf32>
    %359 = arith.mulf %353, %357 : vector<8x32xf32>
    %360 = arith.addf %358, %359 : vector<8x32xf32>
    %361 = math.tanh %360 : vector<8x32xf32>
    %362 = arith.mulf %355, %361 : vector<8x32xf32>
    %363 = vector.extract_strided_slice %49 {offsets = [56, 0], sizes = [8, 8], strides = [1, 1]} : vector<64x8xf32> to vector<8x8xf32>
    %364 = vector.extract_strided_slice %50 {offsets = [56, 0], sizes = [8, 8], strides = [1, 1]} : vector<64x8xf32> to vector<8x8xf32>
    %365 = vector.extract_strided_slice %65 {offsets = [56, 0], sizes = [8, 32], strides = [1, 1]} : vector<64x32xf32> to vector<8x32xf32>
    %366 = arith.mulf %362, %365 : vector<8x32xf32>
    %367 = arith.truncf %366 : vector<8x32xf32> to vector<8x32xbf16>
    %cst_91 = arith.constant dense<0.000000e+00> : vector<8x136xf32>
    %368 = tpu.matmul %367, %53, %cst_91 {dimension_numbers = #tpu.dot_dimension_numbers<[1], [0], [0], [1], [0, 0, 1, 1], [], []>} : vector<8x32xbf16>, vector<32x136xbf16>, vector<8x136xf32> -> vector<8x136xf32>
    %369 = vector.extract_strided_slice %368 {offsets = [0, 0], sizes = [8, 128], strides = [1, 1]} : vector<8x136xf32> to vector<8x128xf32>
    %370 = vector.extract_strided_slice %368 {offsets = [0, 128], sizes = [8, 8], strides = [1, 1]} : vector<8x136xf32> to vector<8x8xf32>
    %371 = vector.extract_strided_slice %68 {offsets = [56, 0], sizes = [8, 8], strides = [1, 1]} : vector<64x8xf32> to vector<8x8xf32>
    %372 = arith.addf %370, %371 : vector<8x8xf32>
    %373 = arith.addf %372, %48 : vector<8x8xf32>
    %374 = arith.subf %363, %373 : vector<8x8xf32>
    %375 = math.absf %374 : vector<8x8xf32>
    %376 = vector.extract_strided_slice %51 {offsets = [56, 0], sizes = [8, 8], strides = [1, 1]} : vector<64x8xf32> to vector<8x8xf32>
    %377 = arith.mulf %375, %376 : vector<8x8xf32>
    %378 = arith.addf %337, %377 : vector<8x8xf32>
    %379 = arith.mulf %364, %363 : vector<8x8xf32>
    %cst_92 = arith.constant 1.000000e+00 : f32
    %380 = vector.broadcast %cst_92 : f32 to vector<8x8xf32>
    %381 = arith.subf %380, %364 : vector<8x8xf32>
    %382 = arith.mulf %381, %373 : vector<8x8xf32>
    %383 = arith.addf %379, %382 : vector<8x8xf32>
    %384 = arith.truncf %383 : vector<8x8xf32> to vector<8x8xbf16>
    %cst_93 = arith.constant dense<0.000000e+00> : vector<8x128xf32>
    %385 = tpu.matmul %384, %54, %cst_93 {dimension_numbers = #tpu.dot_dimension_numbers<[1], [0], [0], [1], [0, 0, 1, 1], [], []>} : vector<8x8xbf16>, vector<8x128xbf16>, vector<8x128xf32> -> vector<8x128xf32>
    %386 = vector.extract_strided_slice %74 {offsets = [56, 0], sizes = [8, 128], strides = [1, 1]} : vector<64x128xf32> to vector<8x128xf32>
    %387 = arith.addf %385, %386 : vector<8x128xf32>
    %388 = arith.addf %387, %369 : vector<8x128xf32>
    %389 = arith.negf %388 : vector<8x128xf32>
    %390 = math.exp %389 : vector<8x128xf32>
    %cst_94 = arith.constant 1.000000e+00 : f32
    %391 = vector.broadcast %cst_94 : f32 to vector<8x128xf32>
    %392 = arith.addf %391, %390 : vector<8x128xf32>
    %393 = arith.divf %391, %392 : vector<8x128xf32>
    %394 = vector.extract_strided_slice %393 {offsets = [0, 0], sizes = [8, 32], strides = [1, 1]} : vector<8x128xf32> to vector<8x32xf32>
    %395 = vector.extract_strided_slice %393 {offsets = [0, 32], sizes = [8, 32], strides = [1, 1]} : vector<8x128xf32> to vector<8x32xf32>
    %396 = vector.extract_strided_slice %393 {offsets = [0, 64], sizes = [8, 32], strides = [1, 1]} : vector<8x128xf32> to vector<8x32xf32>
    %397 = vector.extract_strided_slice %388 {offsets = [0, 96], sizes = [8, 32], strides = [1, 1]} : vector<8x128xf32> to vector<8x32xf32>
    %398 = math.tanh %397 : vector<8x32xf32>
    %399 = arith.mulf %395, %360 : vector<8x32xf32>
    %400 = arith.mulf %394, %398 : vector<8x32xf32>
    %401 = arith.addf %399, %400 : vector<8x32xf32>
    %402 = math.tanh %401 : vector<8x32xf32>
    %403 = arith.mulf %396, %402 : vector<8x32xf32>
    %404 = tpu.concatenate %96, %137, %178, %219, %260, %301, %342, %383 in 1 : vector<8x8xf32>, vector<8x8xf32>, vector<8x8xf32>, vector<8x8xf32>, vector<8x8xf32>, vector<8x8xf32>, vector<8x8xf32>, vector<8x8xf32> -> vector<8x64xf32>
    %c0_95 = arith.constant 0 : index
    %c0_96 = arith.constant 0 : index
    %405 = vector.load %arg28[%c0_95, %c0_96] : memref<8x64xf32, #tpu.memory_space<vmem>>, vector<8x64xf32>
    tpu.vector_store %arg28[%c0_95, %c0_96], %404 {strides = array<i32>} : memref<8x64xf32, #tpu.memory_space<vmem>>, vector<8x64xf32>,
    %406 = vector.shape_cast %378 : vector<8x8xf32> to vector<1x8x8xf32>
    %cst_97 = arith.constant dense<0.000000e+00> : vector<1xf32>
    %407 = vector.multi_reduction <add>, %406, %cst_97 [1, 2] : vector<1x8x8xf32> to vector<1xf32>
    %408 = vector.shape_cast %407 : vector<1xf32> to vector<1x1x1xf32>
    %409 = vector.extract %408[0, 0, 0] : f32 from vector<1x1x1xf32>
    %410 = vector.broadcast %409 : f32 to vector<1x1xf32>
    %c0_98 = arith.constant 0 : index
    %c0_99 = arith.constant 0 : index
    %411 = vector.load %arg26[%c0_98, %c0_99] : memref<32x1xf32, #tpu.memory_space<vmem>>, vector<32x1xf32>
    %cst_100 = arith.constant dense<0.000000e+00> : vector<8x1xf32>
    %412 = tpu.matmul %403, %411, %cst_100 {dimension_numbers = #tpu.dot_dimension_numbers<[1], [0], [0], [1], [0, 0, 1, 1], [], []>} : vector<8x32xf32>, vector<32x1xf32>, vector<8x1xf32> -> vector<8x1xf32>
    %c0_101 = arith.constant 0 : index
    %c0_102 = arith.constant 0 : index
    %413 = vector.load %arg27[%c0_101, %c0_102] : memref<1x1xf32, #tpu.memory_space<vmem>>, vector<1x1xf32>
    %414 = vector.broadcast %413 : vector<1x1xf32> to vector<8x1xf32>
    %415 = arith.addf %412, %414 : vector<8x1xf32>
    %c0_103 = arith.constant 0 : index
    %c0_104 = arith.constant 0 : index
    %416 = vector.load %arg7[%c0_103, %c0_104] : memref<8x1xf32, #tpu.memory_space<vmem>>, vector<8x1xf32>
    %c0_105 = arith.constant 0 : index
    %c0_106 = arith.constant 0 : index
    %417 = vector.load %arg8[%c0_105, %c0_106] : memref<8x1xf32, #tpu.memory_space<vmem>>, vector<8x1xf32>
    %cst_107 = arith.constant 0.000000e+00 : f32
    %418 = vector.broadcast %cst_107 : f32 to vector<8x1xf32>
    %419 = arith.maximumf %415, %418 : vector<8x1xf32>
    %420 = arith.mulf %415, %416 : vector<8x1xf32>
    %421 = arith.subf %419, %420 : vector<8x1xf32>
    %422 = math.absf %415 : vector<8x1xf32>
    %cst_108 = arith.constant 0.000000e+00 : f32
    %423 = vector.broadcast %cst_108 : f32 to vector<8x1xf32>
    %424 = arith.subf %423, %422 : vector<8x1xf32>
    %425 = math.exp %424 : vector<8x1xf32>
    %cst_109 = arith.constant 1.000000e+00 : f32
    %426 = vector.broadcast %cst_109 : f32 to vector<8x1xf32>
    %427 = arith.addf %426, %425 : vector<8x1xf32>
    %428 = math.log %427 : vector<8x1xf32>
    %429 = arith.addf %421, %428 : vector<8x1xf32>
    %430 = arith.mulf %429, %417 : vector<8x1xf32>
    %431 = vector.shape_cast %430 : vector<8x1xf32> to vector<1x8x1xf32>
    %cst_110 = arith.constant dense<0.000000e+00> : vector<1xf32>
    %432 = vector.multi_reduction <add>, %431, %cst_110 [1, 2] : vector<1x8x1xf32> to vector<1xf32>
    %433 = vector.shape_cast %432 : vector<1xf32> to vector<1x1x1xf32>
    %434 = vector.extract %433[0, 0, 0] : f32 from vector<1x1x1xf32>
    %435 = vector.broadcast %434 : f32 to vector<1x1xf32>
    %cst_111 = arith.constant 2.500000e-01 : f32
    %436 = vector.broadcast %cst_111 : f32 to vector<1x1xf32>
    %437 = arith.mulf %435, %436 : vector<1x1xf32>
    %cst_112 = arith.constant 3.000000e-01 : f32
    %438 = vector.broadcast %cst_112 : f32 to vector<1x1xf32>
    %439 = arith.mulf %438, %410 : vector<1x1xf32>
    %440 = arith.addf %437, %439 : vector<1x1xf32>
    %441 = arith.addf %440, %21 : vector<1x1xf32>
    %c0_113 = arith.constant 0 : index
    %c0_114 = arith.constant 0 : index
    %442 = vector.load %arg30[%c0_113, %c0_114] : memref<1x1xf32, #tpu.memory_space<vmem>>, vector<1x1xf32>
    tpu.vector_store %arg30[%c0_113, %c0_114], %441 {strides = array<i32>} : memref<1x1xf32, #tpu.memory_space<vmem>>, vector<1x1xf32>,
    %443 = arith.negf %415 : vector<8x1xf32>
    %444 = math.exp %443 : vector<8x1xf32>
    %cst_115 = arith.constant 1.000000e+00 : f32
    %445 = vector.broadcast %cst_115 : f32 to vector<8x1xf32>
    %446 = arith.addf %445, %444 : vector<8x1xf32>
    %447 = arith.divf %445, %446 : vector<8x1xf32>
    %c0_116 = arith.constant 0 : index
    %c0_117 = arith.constant 0 : index
    %448 = vector.load %arg29[%c0_116, %c0_117] : memref<8x1xf32, #tpu.memory_space<vmem>>, vector<8x1xf32>
    tpu.vector_store %arg29[%c0_116, %c0_117], %447 {strides = array<i32>} : memref<8x1xf32, #tpu.memory_space<vmem>>, vector<8x1xf32>,
    return
  }
}

</mosaic_0001>

<llo_original>
// kernel: crossnet_forward.1
$region0: #{crossnet_forward.1}
  #allocation0 [shape = 'u32[]', space=smem, size = 0x4, offset = 0x4, fixed_abs, tag = 'smem constant byte address 0x4 - core index']
  #allocation1 [shape = 'u32[144,128]{1,0:T(1,128)}', space=vmem, size = 0x12000, scoped, tag = 'internal scratch']
  #allocation2 [shape = 'f32[1,1]{1,0:T(1,128)S(1)}', space=vmem, size = 0x200, scoped, tag = 'scoped memory for crossnet_forward.1']
  #allocation3 [shape = 'f32[1,1]{1,0:T(1,128)S(1)}', space=vmem, size = 0x200, scoped, tag = 'scoped memory for crossnet_forward.1']
  %s0 = inlined_call_operand.smem [shape: u32[31], index: -1, kind: input, shape index: {}]
  %s1 = sld [smem:[%s0]]
  %s2 = scalar_lea.smem %s0, 1
  %s3 = sld [smem:[%s2]]
  %s4 = scalar_lea.smem %s0, 2
  %s5 = sld [smem:[%s4]]
  %s6 = scalar_lea.smem %s0, 3
  %s7 = sld [smem:[%s6]]
  %s8 = scalar_lea.smem %s0, 4
  %s9 = sld [smem:[%s8]]
  %s10 = scalar_lea.smem %s0, 5
  %s11 = sld [smem:[%s10]]
  %s12 = scalar_lea.smem %s0, 6
  %s13 = sld [smem:[%s12]]
  %s14 = scalar_lea.smem %s0, 7
  %s15 = sld [smem:[%s14]]
  %s16 = scalar_lea.smem %s0, 8
  %s17 = sld [smem:[%s16]]
  %s18 = scalar_lea.smem %s0, 9
  %s19 = sld [smem:[%s18]]
  %s20 = scalar_lea.smem %s0, 10
  %s21 = sld [smem:[%s20]]
  %s22 = scalar_lea.smem %s0, 11
  %s23 = sld [smem:[%s22]]
  %s24 = scalar_lea.smem %s0, 12
  %s25 = sld [smem:[%s24]]
  %s26 = scalar_lea.smem %s0, 13
  %s27 = sld [smem:[%s26]]
  %s28 = scalar_lea.smem %s0, 14
  %s29 = sld [smem:[%s28]]
  %s30 = scalar_lea.smem %s0, 15
  %s31 = sld [smem:[%s30]]
  %s32 = scalar_lea.smem %s0, 16
  %s33 = sld [smem:[%s32]]
  %s34 = scalar_lea.smem %s0, 17
  %s35 = sld [smem:[%s34]]
  %s36 = scalar_lea.smem %s0, 18
  %s37 = sld [smem:[%s36]]
  %s38 = scalar_lea.smem %s0, 19
  %s39 = sld [smem:[%s38]]
  %s40 = scalar_lea.smem %s0, 20
  %s41 = sld [smem:[%s40]]
  %s42 = scalar_lea.smem %s0, 21
  %s43 = sld [smem:[%s42]]
  %s44 = scalar_lea.smem %s0, 22
  %s45 = sld [smem:[%s44]]
  %s46 = scalar_lea.smem %s0, 23
  %s47 = sld [smem:[%s46]]
  %s48 = scalar_lea.smem %s0, 24
  %s49 = sld [smem:[%s48]]
  %s50 = scalar_lea.smem %s0, 25
  %s51 = sld [smem:[%s50]]
  %s52 = scalar_lea.smem %s0, 26
  %s53 = sld [smem:[%s52]]
  %s54 = scalar_lea.smem %s0, 27
  %s55 = sld [smem:[%s54]]
  %s56 = scalar_lea.smem %s0, 28
  %s57 = sld [smem:[%s56]]
  %s58 = scalar_lea.smem %s0, 29
  %s59 = sld [smem:[%s58]]
  %s60 = scalar_lea.smem %s0, 30
  %s61 = sld [smem:[%s60]]
  %62 = xla_tuple %s57, %s59, %s61
  %s63 = sld [smem:[#allocation0]]
  $region138: #{crossnet_forward.1} parent=0
    _
  %s65 = ssub.s32 1, %s63
  %s66 = scalar_select 0, %s65, %s63
  %v67 = vstv %s13
  %68 = vst [vmem:[#allocation2] sm:$0x1] %v67
  %v69 = vstv %s55
  %70 = vst [vmem:[#allocation3] sm:$0x1] %v69
  $region1: #{crossnet_forward.1} parent=0
    #allocation4 [shape = 'u8[512]{0}', space=vmem, size = 0x400, scoped, tag = 'output window, operand 2, single buffered']
    #allocation5 [shape = 's32[1]{0}', space=sflag, size = 0x4, scoped, tag = 'scoped memory for crossnet_forward.1']
    %71 = vsyncpa [#allocation5], 0
    // Predicated region
    $region2: #{crossnet_forward.1} parent=1 // pred_check
      _
    $region3: #{crossnet_forward.1} parent=1 // pred_check_branch
      %73 = sbr.rel (0) target = $region5
    $region4: #{crossnet_forward.1} parent=1 // pred_region
      _
    $region5: #{crossnet_forward.1} parent=1 // pred_fallthru
      _
    // Predicated region
    $region6: #{crossnet_forward.1} parent=1 // pred_check
      _
    $region7: #{crossnet_forward.1} parent=1 // pred_check_branch
      %75 = sbr.rel (0) target = $region9
    $region8: #{crossnet_forward.1} parent=1 // pred_region
      _
    $region9: #{crossnet_forward.1} parent=1 // pred_fallthru
      _
    // Predicated region
    $region10: #{crossnet_forward.1} parent=1 // pred_check
      _
    $region11: #{crossnet_forward.1} parent=1 // pred_check_branch
      %77 = sbr.rel (0) target = $region13
    $region12: #{crossnet_forward.1} parent=1 // pred_region
      _
    $region13: #{crossnet_forward.1} parent=1 // pred_fallthru
      _
    // Predicated region
    $region14: #{crossnet_forward.1} parent=1 // pred_check
      _
    $region15: #{crossnet_forward.1} parent=1 // pred_check_branch
      %79 = sbr.rel (0) target = $region17
    $region16: #{crossnet_forward.1} parent=1 // pred_region
      _
    $region17: #{crossnet_forward.1} parent=1 // pred_fallthru
      _
    // Predicated region
    $region18: #{crossnet_forward.1} parent=1 // pred_check
      _
    $region19: #{crossnet_forward.1} parent=1 // pred_check_branch
      %81 = sbr.rel (0) target = $region21
    $region20: #{crossnet_forward.1} parent=1 // pred_region
      _
    $region21: #{crossnet_forward.1} parent=1 // pred_fallthru
      _
    // Predicated region
    $region22: #{crossnet_forward.1} parent=1 // pred_check
      _
    $region23: #{crossnet_forward.1} parent=1 // pred_check_branch
      %83 = sbr.rel (0) target = $region25
    $region24: #{crossnet_forward.1} parent=1 // pred_region
      _
    $region25: #{crossnet_forward.1} parent=1 // pred_fallthru
      _
    // Predicated region
    $region26: #{crossnet_forward.1} parent=1 // pred_check
      _
    $region27: #{crossnet_forward.1} parent=1 // pred_check_branch
      %85 = sbr.rel (0) target = $region29
    $region28: #{crossnet_forward.1} parent=1 // pred_region
      _
    $region29: #{crossnet_forward.1} parent=1 // pred_fallthru
      _
    // Predicated region
    $region30: #{crossnet_forward.1} parent=1 // pred_check
      _
    $region31: #{crossnet_forward.1} parent=1 // pred_check_branch
      %87 = sbr.rel (0) target = $region33
    $region32: #{crossnet_forward.1} parent=1 // pred_region
      _
    $region33: #{crossnet_forward.1} parent=1 // pred_fallthru
      _
    // Predicated region
    $region34: #{crossnet_forward.1} parent=1 // pred_check
      _
    $region35: #{crossnet_forward.1} parent=1 // pred_check_branch
      %89 = sbr.rel (0) target = $region37
    $region36: #{crossnet_forward.1} parent=1 // pred_region
      _
    $region37: #{crossnet_forward.1} parent=1 // pred_fallthru
      _
    // Predicated region
    $region38: #{crossnet_forward.1} parent=1 // pred_check
      _
    $region39: #{crossnet_forward.1} parent=1 // pred_check_branch
      %91 = sbr.rel (0) target = $region41
    $region40: #{crossnet_forward.1} parent=1 // pred_region
      _
    $region41: #{crossnet_forward.1} parent=1 // pred_fallthru
      _
    // Predicated region
    $region42: #{crossnet_forward.1} parent=1 // pred_check
      _
    $region43: #{crossnet_forward.1} parent=1 // pred_check_branch
      %93 = sbr.rel (0) target = $region45
    $region44: #{crossnet_forward.1} parent=1 // pred_region
      _
    $region45: #{crossnet_forward.1} parent=1 // pred_fallthru
      _
    // Predicated region
    $region46: #{crossnet_forward.1} parent=1 // pred_check
      _
    $region47: #{crossnet_forward.1} parent=1 // pred_check_branch
      %95 = sbr.rel (0) target = $region49
    $region48: #{crossnet_forward.1} parent=1 // pred_region
      _
    $region49: #{crossnet_forward.1} parent=1 // pred_fallthru
      _
    // Predicated region
    $region50: #{crossnet_forward.1} parent=1 // pred_check
      _
    $region51: #{crossnet_forward.1} parent=1 // pred_check_branch
      %97 = sbr.rel (0) target = $region53
    $region52: #{crossnet_forward.1} parent=1 // pred_region
      _
    $region53: #{crossnet_forward.1} parent=1 // pred_fallthru
      _
    // Predicated region
    $region54: #{crossnet_forward.1} parent=1 // pred_check
      _
    $region55: #{crossnet_forward.1} parent=1 // pred_check_branch
      %99 = sbr.rel (0) target = $region57
    $region56: #{crossnet_forward.1} parent=1 // pred_region
      _
    $region57: #{crossnet_forward.1} parent=1 // pred_fallthru
      _
    // Predicated region
    $region58: #{crossnet_forward.1} parent=1 // pred_check
      _
    $region59: #{crossnet_forward.1} parent=1 // pred_check_branch
      %101 = sbr.rel (0) target = $region61
    $region60: #{crossnet_forward.1} parent=1 // pred_region
      _
    $region61: #{crossnet_forward.1} parent=1 // pred_fallthru
      _
    // Predicated region
    $region62: #{crossnet_forward.1} parent=1 // pred_check
      _
    $region63: #{crossnet_forward.1} parent=1 // pred_check_branch
      %103 = sbr.rel (0) target = $region65
    $region64: #{crossnet_forward.1} parent=1 // pred_region
      _
    $region65: #{crossnet_forward.1} parent=1 // pred_fallthru
      _
    // Predicated region
    $region66: #{crossnet_forward.1} parent=1 // pred_check
      _
    $region67: #{crossnet_forward.1} parent=1 // pred_check_branch
      %105 = sbr.rel (0) target = $region69
    $region68: #{crossnet_forward.1} parent=1 // pred_region
      _
    $region69: #{crossnet_forward.1} parent=1 // pred_fallthru
      _
    // Predicated region
    $region70: #{crossnet_forward.1} parent=1 // pred_check
      _
    $region71: #{crossnet_forward.1} parent=1 // pred_check_branch
      %107 = sbr.rel (0) target = $region73
    $region72: #{crossnet_forward.1} parent=1 // pred_region
      _
    $region73: #{crossnet_forward.1} parent=1 // pred_fallthru
      _
    // Predicated region
    $region74: #{crossnet_forward.1} parent=1 // pred_check
      _
    $region75: #{crossnet_forward.1} parent=1 // pred_check_branch
      %109 = sbr.rel (0) target = $region77
    $region76: #{crossnet_forward.1} parent=1 // pred_region
      _
    $region77: #{crossnet_forward.1} parent=1 // pred_fallthru
      _
    // Predicated region
    $region78: #{crossnet_forward.1} parent=1 // pred_check
      _
    $region79: #{crossnet_forward.1} parent=1 // pred_check_branch
      %111 = sbr.rel (0) target = $region81
    $region80: #{crossnet_forward.1} parent=1 // pred_region
      _
    $region81: #{crossnet_forward.1} parent=1 // pred_fallthru
      _
    // Predicated region
    $region82: #{crossnet_forward.1} parent=1 // pred_check
      _
    $region83: #{crossnet_forward.1} parent=1 // pred_check_branch
      %113 = sbr.rel (0) target = $region85
    $region84: #{crossnet_forward.1} parent=1 // pred_region
      _
    $region85: #{crossnet_forward.1} parent=1 // pred_fallthru
      _
    // Predicated region
    $region86: #{crossnet_forward.1} parent=1 // pred_check
      _
    $region87: #{crossnet_forward.1} parent=1 // pred_check_branch
      %115 = sbr.rel (0) target = $region89
    $region88: #{crossnet_forward.1} parent=1 // pred_region
      _
    $region89: #{crossnet_forward.1} parent=1 // pred_fallthru
      _
    // Predicated region
    $region90: #{crossnet_forward.1} parent=1 // pred_check
      _
    $region91: #{crossnet_forward.1} parent=1 // pred_check_branch
      %117 = sbr.rel (0) target = $region93
    $region92: #{crossnet_forward.1} parent=1 // pred_region
      _
    $region93: #{crossnet_forward.1} parent=1 // pred_fallthru
      _
    // Predicated region
    $region94: #{crossnet_forward.1} parent=1 // pred_check
      _
    $region95: #{crossnet_forward.1} parent=1 // pred_check_branch
      %119 = sbr.rel (0) target = $region97
    $region96: #{crossnet_forward.1} parent=1 // pred_region
      _
    $region97: #{crossnet_forward.1} parent=1 // pred_fallthru
      _
    // Predicated region
    $region98: #{crossnet_forward.1} parent=1 // pred_check
      _
    $region99: #{crossnet_forward.1} parent=1 // pred_check_branch
      %121 = sbr.rel (0) target = $region101
    $region100: #{crossnet_forward.1} parent=1 // pred_region
      _
    $region101: #{crossnet_forward.1} parent=1 // pred_fallthru
      _
    // Predicated region
    $region102: #{crossnet_forward.1} parent=1 // pred_check
      _
    $region103: #{crossnet_forward.1} parent=1 // pred_check_branch
      %123 = sbr.rel (0) target = $region105
    $region104: #{crossnet_forward.1} parent=1 // pred_region
      _
    $region105: #{crossnet_forward.1} parent=1 // pred_fallthru
      _
    // Predicated region
    $region106: #{crossnet_forward.1} parent=1 // pred_check
      _
    $region107: #{crossnet_forward.1} parent=1 // pred_check_branch
      %125 = sbr.rel (0) target = $region109
    $region108: #{crossnet_forward.1} parent=1 // pred_region
      _
    $region109: #{crossnet_forward.1} parent=1 // pred_fallthru
      _
    // Predicated region
    $region110: #{crossnet_forward.1} parent=1 // pred_check
      _
    $region111: #{crossnet_forward.1} parent=1 // pred_check_branch
      %127 = sbr.rel (0) target = $region113
    $region112: #{crossnet_forward.1} parent=1 // pred_region
      _
    $region113: #{crossnet_forward.1} parent=1 // pred_fallthru
      _
    %v129 = vld [vmem:[%s9] sm:$0xff]
    %v130 = vld [vmem:[%s11] sm:$0xff]
    %v131 = vld [vmem:[%s19] sm:$0xff]
    %v132 = vld [vmem:[%s21] sm:$0x1]
    %v134 = vlaneseq
    %v135 = vshrl.u32 %v134, 7
    %v136 = vsub.s32 0, %v135
    %v137 = vrot.slane %v132, %v136
    %vm139 = vcmask 64512
    %v141 = vsel %vm139, %v129, 0
    %143 = vmatprep.subr.mxu0 0.0
    %144 = vmatpush1.msra.mxu0 %v131
    %145 = vmatprep.subr.mxu0 0.0
    %146 = vmatpush1.msra.mxu0 0.0
    %147 = vmatprep.subr.mxu0 0.0
    %148 = vmatpush1.msra.mxu0 0.0
    %149 = vmatprep.subr.mxu0 0.0
    %150 = vmatpush1.msra.mxu0 0.0
    %151 = vmatprep.subr.mxu0 0.0
    %152 = vmatpush1.msra.mxu0 0.0
    %153 = vmatprep.subr.mxu0 0.0
    %154 = vmatpush1.msra.mxu0 0.0
    %155 = vmatprep.subr.mxu0 0.0
    %156 = vmatpush1.msra.mxu0 0.0
    %157 = vmatprep.subr.mxu0 0.0
    %158 = vmatpush1.msra.mxu0 0.0
    %159 = vmatprep.subr.mxu0 0.0
    %160 = vmatpush1.msra.mxu0 0.0
    %161 = vmatprep.subr.mxu0 0.0
    %162 = vmatpush1.msra.mxu0 0.0
    %163 = vmatprep.subr.mxu0 0.0
    %164 = vmatpush1.msra.mxu0 0.0
    %165 = vmatprep.subr.mxu0 0.0
    %166 = vmatpush1.msra.mxu0 0.0
    %167 = vmatprep.subr.mxu0 0.0
    %168 = vmatpush1.msra.mxu0 0.0
    %169 = vmatprep.subr.mxu0 0.0
    %170 = vmatpush1.msra.mxu0 0.0
    %171 = vmatprep.subr.mxu0 0.0
    %172 = vmatpush1.msra.mxu0 0.0
    %173 = vmatprep.subr.mxu0 0.0
    %174 = vmatpush1.msra.mxu0 0.0
    %175 = vmatprep.subr.mxu0 0.0
    %176 = vmatpush1.msra.mxu0 0.0
    %177 = vmatprep.subr.mxu0 0.0
    %178 = vmatpush1.msra.mxu0 0.0
    %179 = vmatprep.subr.mxu0 0.0
    %180 = vmatpush1.msra.mxu0 0.0
    %181 = vmatprep.subr.mxu0 0.0
    %182 = vmatpush1.msra.mxu0 0.0
    %183 = vmatprep.subr.mxu0 0.0
    %184 = vmatpush1.msra.mxu0 0.0
    %185 = vmatprep.subr.mxu0 0.0
    %186 = vmatpush1.msra.mxu0 0.0
    %187 = vmatprep.subr.mxu0 0.0
    %188 = vmatpush1.msra.mxu0 0.0
    %189 = vmatprep.subr.mxu0 0.0
    %190 = vmatpush1.msra.mxu0 0.0
    %191 = vmatprep.subr.mxu0 0.0
    %192 = vmatpush1.msra.mxu0 0.0
    %193 = vmatprep.subr.mxu0 0.0
    %194 = vmatpush1.msra.mxu0 0.0
    %195 = vmatprep.subr.mxu0 0.0
    %196 = vmatpush1.msra.mxu0 0.0
    %197 = vmatprep.subr.mxu0 0.0
    %198 = vmatpush1.msra.mxu0 0.0
    %199 = vmatprep.subr.mxu0 0.0
    %200 = vmatpush1.msra.mxu0 0.0
    %201 = vmatprep.subr.mxu0 0.0
    %202 = vmatpush1.msra.mxu0 0.0
    %203 = vmatprep.subr.mxu0 0.0
    %204 = vmatpush1.msra.mxu0 0.0
    %205 = vmatprep.subr.mxu0 0.0
    %206 = vmatpush1.msra.mxu0 0.0
    %207 = vmatprep.mubr.f32.mxu0 0.0
    %208 = vmatmul.mubr.f32.gmra.mrb[0].mxu0 %v141
    %v209 = vpop.f32.mrb[0].mxu0
    %v210 = vadd.f32 %v137, %v209
    %v211 = vpop.f32.mrb[0].mxu0
    %212 = vdwg.mxu0
    %v213 = vmul.f32 %v130, %v129
    %v214 = vsub.f32 1.0, %v130
    %v215 = vmul.f32 %v214, %v210
    %v216 = vadd.f32 %v213, %v215
    %v217 = vsub.f32 %v129, %v216
    %v218 = vand.u32 2147483647, %v217
    %v219 = vmul.f32 %v218, %v130
    %v220 = vsel %vm139, %v219, 0.0
    %221 = vadd.xlane.f32.xlu0 %v220
    %v222 = vpop.xlane.xlu0 %221
    %v223 = vrot.slane %v222, 4
    %v224 = vadd.f32 %v222, %v223
    %v225 = vrot.slane %v224, 2
    %v226 = vadd.f32 %v224, %v225
    %v227 = vrot.slane %v226, 1
    %v228 = vadd.f32 %v226, %v227
    %s229 = vtos %v228
    %v230 = vstv %s229
    %v231 = vld [vmem:[#allocation2] sm:$0x1]
    %v232 = vmul.f32 %v230, %v231
    %v233 = vld [vmem:[%s23] sm:$0xff]
    %v234 = vld [vmem:[%s25] sm:$0x1]
    %v236 = vlaneseq
    %v237 = vshrl.u32 %v236, 7
    %v238 = vsub.s32 0, %v237
    %v239 = vrot.slane %v234, %v238
    %v242 = vsel %vm139, %v216, 0
    %244 = vmatprep.subr.mxu0 0.0
    %245 = vmatpush1.msra.mxu0 %v233
    %246 = vmatprep.subr.mxu0 0.0
    %247 = vmatpush1.msra.mxu0 0.0
    %248 = vmatprep.subr.mxu0 0.0
    %249 = vmatpush1.msra.mxu0 0.0
    %250 = vmatprep.subr.mxu0 0.0
    %251 = vmatpush1.msra.mxu0 0.0
    %252 = vmatprep.subr.mxu0 0.0
    %253 = vmatpush1.msra.mxu0 0.0
    %254 = vmatprep.subr.mxu0 0.0
    %255 = vmatpush1.msra.mxu0 0.0
    %256 = vmatprep.subr.mxu0 0.0
    %257 = vmatpush1.msra.mxu0 0.0
    %258 = vmatprep.subr.mxu0 0.0
    %259 = vmatpush1.msra.mxu0 0.0
    %260 = vmatprep.subr.mxu0 0.0
    %261 = vmatpush1.msra.mxu0 0.0
    %262 = vmatprep.subr.mxu0 0.0
    %263 = vmatpush1.msra.mxu0 0.0
    %264 = vmatprep.subr.mxu0 0.0
    %265 = vmatpush1.msra.mxu0 0.0
    %266 = vmatprep.subr.mxu0 0.0
    %267 = vmatpush1.msra.mxu0 0.0
    %268 = vmatprep.subr.mxu0 0.0
    %269 = vmatpush1.msra.mxu0 0.0
    %270 = vmatprep.subr.mxu0 0.0
    %271 = vmatpush1.msra.mxu0 0.0
    %272 = vmatprep.subr.mxu0 0.0
    %273 = vmatpush1.msra.mxu0 0.0
    %274 = vmatprep.subr.mxu0 0.0
    %275 = vmatpush1.msra.mxu0 0.0
    %276 = vmatprep.subr.mxu0 0.0
    %277 = vmatpush1.msra.mxu0 0.0
    %278 = vmatprep.subr.mxu0 0.0
    %279 = vmatpush1.msra.mxu0 0.0
    %280 = vmatprep.subr.mxu0 0.0
    %281 = vmatpush1.msra.mxu0 0.0
    %282 = vmatprep.subr.mxu0 0.0
    %283 = vmatpush1.msra.mxu0 0.0
    %284 = vmatprep.subr.mxu0 0.0
    %285 = vmatpush1.msra.mxu0 0.0
    %286 = vmatprep.subr.mxu0 0.0
    %287 = vmatpush1.msra.mxu0 0.0
    %288 = vmatprep.subr.mxu0 0.0
    %289 = vmatpush1.msra.mxu0 0.0
    %290 = vmatprep.subr.mxu0 0.0
    %291 = vmatpush1.msra.mxu0 0.0
    %292 = vmatprep.subr.mxu0 0.0
    %293 = vmatpush1.msra.mxu0 0.0
    %294 = vmatprep.subr.mxu0 0.0
    %295 = vmatpush1.msra.mxu0 0.0
    %296 = vmatprep.subr.mxu0 0.0
    %297 = vmatpush1.msra.mxu0 0.0
    %298 = vmatprep.subr.mxu0 0.0
    %299 = vmatpush1.msra.mxu0 0.0
    %300 = vmatprep.subr.mxu0 0.0
    %301 = vmatpush1.msra.mxu0 0.0
    %302 = vmatprep.subr.mxu0 0.0
    %303 = vmatpush1.msra.mxu0 0.0
    %304 = vmatprep.subr.mxu0 0.0
    %305 = vmatpush1.msra.mxu0 0.0
    %306 = vmatprep.subr.mxu0 0.0
    %307 = vmatpush1.msra.mxu0 0.0
    %308 = vmatprep.mubr.f32.mxu0 0.0
    %309 = vmatmul.mubr.f32.gmra.mrb[0].mxu0 %v242
    %v310 = vpop.f32.mrb[0].mxu0
    %v311 = vadd.f32 %v239, %v310
    %v312 = vpop.f32.mrb[0].mxu0
    %313 = vdwg.mxu0
    %v314 = vmax.f32 %v311, 0.0
    %v315 = vld [vmem:[%s27] sm:$0xff]
    %v316 = vld [vmem:[%s27 + $0x8] sm:$0xff]
    %v317 = vld [vmem:[%s27 + $0x10] sm:$0xff]
    %v318 = vld [vmem:[%s27 + $0x18] sm:$0xff]
    %v319 = vld [vmem:[%s29] sm:$0x1]
    %v321 = vlaneseq
    %v322 = vshrl.u32 %v321, 7
    %v323 = vsub.s32 0, %v322
    %v324 = vrot.slane %v319, %v323
    %vm326 = vcmask 261120
    %v328 = vsel %vm326, %v314, 0
    %330 = vmatprep.subr.mxu0 0.0
    %331 = vmatpush1.msra.mxu0 %v315
    %332 = vmatprep.subr.mxu0 0.0
    %333 = vmatpush1.msra.mxu0 %v316
    %334 = vmatprep.subr.mxu0 0.0
    %335 = vmatpush1.msra.mxu0 %v317
    %336 = vmatprep.subr.mxu0 0.0
    %337 = vmatpush1.msra.mxu0 %v318
    %338 = vmatprep.subr.mxu0 0.0
    %339 = vmatpush1.msra.mxu0 0.0
    %340 = vmatprep.subr.mxu0 0.0
    %341 = vmatpush1.msra.mxu0 0.0
    %342 = vmatprep.subr.mxu0 0.0
    %343 = vmatpush1.msra.mxu0 0.0
    %344 = vmatprep.subr.mxu0 0.0
    %345 = vmatpush1.msra.mxu0 0.0
    %346 = vmatprep.subr.mxu0 0.0
    %347 = vmatpush1.msra.mxu0 0.0
    %348 = vmatprep.subr.mxu0 0.0
    %349 = vmatpush1.msra.mxu0 0.0
    %350 = vmatprep.subr.mxu0 0.0
    %351 = vmatpush1.msra.mxu0 0.0
    %352 = vmatprep.subr.mxu0 0.0
    %353 = vmatpush1.msra.mxu0 0.0
    %354 = vmatprep.subr.mxu0 0.0
    %355 = vmatpush1.msra.mxu0 0.0
    %356 = vmatprep.subr.mxu0 0.0
    %357 = vmatpush1.msra.mxu0 0.0
    %358 = vmatprep.subr.mxu0 0.0
    %359 = vmatpush1.msra.mxu0 0.0
    %360 = vmatprep.subr.mxu0 0.0
    %361 = vmatpush1.msra.mxu0 0.0
    %362 = vmatprep.subr.mxu0 0.0
    %363 = vmatpush1.msra.mxu0 0.0
    %364 = vmatprep.subr.mxu0 0.0
    %365 = vmatpush1.msra.mxu0 0.0
    %366 = vmatprep.subr.mxu0 0.0
    %367 = vmatpush1.msra.mxu0 0.0
    %368 = vmatprep.subr.mxu0 0.0
    %369 = vmatpush1.msra.mxu0 0.0
    %370 = vmatprep.subr.mxu0 0.0
    %371 = vmatpush1.msra.mxu0 0.0
    %372 = vmatprep.subr.mxu0 0.0
    %373 = vmatpush1.msra.mxu0 0.0
    %374 = vmatprep.subr.mxu0 0.0
    %375 = vmatpush1.msra.mxu0 0.0
    %376 = vmatprep.subr.mxu0 0.0
    %377 = vmatpush1.msra.mxu0 0.0
    %378 = vmatprep.subr.mxu0 0.0
    %379 = vmatpush1.msra.mxu0 0.0
    %380 = vmatprep.subr.mxu0 0.0
    %381 = vmatpush1.msra.mxu0 0.0
    %382 = vmatprep.subr.mxu0 0.0
    %383 = vmatpush1.msra.mxu0 0.0
    %384 = vmatprep.subr.mxu0 0.0
    %385 = vmatpush1.msra.mxu0 0.0
    %386 = vmatprep.subr.mxu0 0.0
    %387 = vmatpush1.msra.mxu0 0.0
    %388 = vmatprep.subr.mxu0 0.0
    %389 = vmatpush1.msra.mxu0 0.0
    %390 = vmatprep.subr.mxu0 0.0
    %391 = vmatpush1.msra.mxu0 0.0
    %392 = vmatprep.subr.mxu0 0.0
    %393 = vmatpush1.msra.mxu0 0.0
    %394 = vmatprep.mubr.f32.mxu0 0.0
    %395 = vmatmul.mubr.f32.gmra.mrb[0].mxu0 %v328
    %v396 = vpop.f32.mrb[0].mxu0
    %v397 = vadd.f32 %v324, %v396
    %v398 = vpop.f32.mrb[0].mxu0
    %399 = vdwg.mxu0
    %v400 = vmax.f32 %v397, 0.0
    %v401 = vld [vmem:[%s31] sm:$0xff]
    %v402 = vld [vmem:[%s31 + $0x8] sm:$0xff]
    %v403 = vld [vmem:[%s31 + $0x10] sm:$0xff]
    %v404 = vld [vmem:[%s31 + $0x18] sm:$0xff]
    %v405 = vld [vmem:[%s33] sm:$0x1]
    %v407 = vlaneseq
    %v408 = vshrl.u32 %v407, 7
    %v409 = vsub.s32 0, %v408
    %v410 = vrot.slane %v405, %v409
    %v413 = vsel %vm326, %v400, 0
    %415 = vmatprep.subr.mxu0 0.0
    %416 = vmatpush1.msra.mxu0 %v401
    %417 = vmatprep.subr.mxu0 0.0
    %418 = vmatpush1.msra.mxu0 %v402
    %419 = vmatprep.subr.mxu0 0.0
    %420 = vmatpush1.msra.mxu0 %v403
    %421 = vmatprep.subr.mxu0 0.0
    %422 = vmatpush1.msra.mxu0 %v404
    %423 = vmatprep.subr.mxu0 0.0
    %424 = vmatpush1.msra.mxu0 0.0
    %425 = vmatprep.subr.mxu0 0.0
    %426 = vmatpush1.msra.mxu0 0.0
    %427 = vmatprep.subr.mxu0 0.0
    %428 = vmatpush1.msra.mxu0 0.0
    %429 = vmatprep.subr.mxu0 0.0
    %430 = vmatpush1.msra.mxu0 0.0
    %431 = vmatprep.subr.mxu0 0.0
    %432 = vmatpush1.msra.mxu0 0.0
    %433 = vmatprep.subr.mxu0 0.0
    %434 = vmatpush1.msra.mxu0 0.0
    %435 = vmatprep.subr.mxu0 0.0
    %436 = vmatpush1.msra.mxu0 0.0
    %437 = vmatprep.subr.mxu0 0.0
    %438 = vmatpush1.msra.mxu0 0.0
    %439 = vmatprep.subr.mxu0 0.0
    %440 = vmatpush1.msra.mxu0 0.0
    %441 = vmatprep.subr.mxu0 0.0
    %442 = vmatpush1.msra.mxu0 0.0
    %443 = vmatprep.subr.mxu0 0.0
    %444 = vmatpush1.msra.mxu0 0.0
    %445 = vmatprep.subr.mxu0 0.0
    %446 = vmatpush1.msra.mxu0 0.0
    %447 = vmatprep.subr.mxu0 0.0
    %448 = vmatpush1.msra.mxu0 0.0
    %449 = vmatprep.subr.mxu0 0.0
    %450 = vmatpush1.msra.mxu0 0.0
    %451 = vmatprep.subr.mxu0 0.0
    %452 = vmatpush1.msra.mxu0 0.0
    %453 = vmatprep.subr.mxu0 0.0
    %454 = vmatpush1.msra.mxu0 0.0
    %455 = vmatprep.subr.mxu0 0.0
    %456 = vmatpush1.msra.mxu0 0.0
    %457 = vmatprep.subr.mxu0 0.0
    %458 = vmatpush1.msra.mxu0 0.0
    %459 = vmatprep.subr.mxu0 0.0
    %460 = vmatpush1.msra.mxu0 0.0
    %461 = vmatprep.subr.mxu0 0.0
    %462 = vmatpush1.msra.mxu0 0.0
    %463 = vmatprep.subr.mxu0 0.0
    %464 = vmatpush1.msra.mxu0 0.0
    %465 = vmatprep.subr.mxu0 0.0
    %466 = vmatpush1.msra.mxu0 0.0
    %467 = vmatprep.subr.mxu0 0.0
    %468 = vmatpush1.msra.mxu0 0.0
    %469 = vmatprep.subr.mxu0 0.0
    %470 = vmatpush1.msra.mxu0 0.0
    %471 = vmatprep.subr.mxu0 0.0
    %472 = vmatpush1.msra.mxu0 0.0
    %473 = vmatprep.subr.mxu0 0.0
    %474 = vmatpush1.msra.mxu0 0.0
    %475 = vmatprep.subr.mxu0 0.0
    %476 = vmatpush1.msra.mxu0 0.0
    %477 = vmatprep.subr.mxu0 0.0
    %478 = vmatpush1.msra.mxu0 0.0
    %479 = vmatprep.mubr.f32.mxu0 0.0
    %480 = vmatmul.mubr.f32.gmra.mrb[0].mxu0 %v413
    %v481 = vpop.f32.mrb[0].mxu0
    %v482 = vadd.f32 %v410, %v481
    %v483 = vpop.f32.mrb[0].mxu0
    %484 = vdwg.mxu0
    %v485 = vmax.f32 %v482, 0.0
    %v486 = vld [vmem:[%s39] sm:$0xff]
    %v487 = vld [vmem:[%s41] sm:$0x1]
    %v489 = vlaneseq
    %v490 = vshrl.u32 %v489, 7
    %v491 = vsub.s32 0, %v490
    %v492 = vrot.slane %v487, %v491
    %494 = vmatprep.subr.mxu0 0.0
    %495 = vmatpush1.msra.mxu0 %v486
    %496 = vmatprep.subr.mxu0 0.0
    %497 = vmatpush1.msra.mxu0 0.0
    %498 = vmatprep.subr.mxu0 0.0
    %499 = vmatpush1.msra.mxu0 0.0
    %500 = vmatprep.subr.mxu0 0.0
    %501 = vmatpush1.msra.mxu0 0.0
    %502 = vmatprep.subr.mxu0 0.0
    %503 = vmatpush1.msra.mxu0 0.0
    %504 = vmatprep.subr.mxu0 0.0
    %505 = vmatpush1.msra.mxu0 0.0
    %506 = vmatprep.subr.mxu0 0.0
    %507 = vmatpush1.msra.mxu0 0.0
    %508 = vmatprep.subr.mxu0 0.0
    %509 = vmatpush1.msra.mxu0 0.0
    %510 = vmatprep.subr.mxu0 0.0
    %511 = vmatpush1.msra.mxu0 0.0
    %512 = vmatprep.subr.mxu0 0.0
    %513 = vmatpush1.msra.mxu0 0.0
    %514 = vmatprep.subr.mxu0 0.0
    %515 = vmatpush1.msra.mxu0 0.0
    %516 = vmatprep.subr.mxu0 0.0
    %517 = vmatpush1.msra.mxu0 0.0
    %518 = vmatprep.subr.mxu0 0.0
    %519 = vmatpush1.msra.mxu0 0.0
    %520 = vmatprep.subr.mxu0 0.0
    %521 = vmatpush1.msra.mxu0 0.0
    %522 = vmatprep.subr.mxu0 0.0
    %523 = vmatpush1.msra.mxu0 0.0
    %524 = vmatprep.subr.mxu0 0.0
    %525 = vmatpush1.msra.mxu0 0.0
    %526 = vmatprep.subr.mxu0 0.0
    %527 = vmatpush1.msra.mxu0 0.0
    %528 = vmatprep.subr.mxu0 0.0
    %529 = vmatpush1.msra.mxu0 0.0
    %530 = vmatprep.subr.mxu0 0.0
    %531 = vmatpush1.msra.mxu0 0.0
    %532 = vmatprep.subr.mxu0 0.0
    %533 = vmatpush1.msra.mxu0 0.0
    %534 = vmatprep.subr.mxu0 0.0
    %535 = vmatpush1.msra.mxu0 0.0
    %536 = vmatprep.subr.mxu0 0.0
    %537 = vmatpush1.msra.mxu0 0.0
    %538 = vmatprep.subr.mxu0 0.0
    %539 = vmatpush1.msra.mxu0 0.0
    %540 = vmatprep.subr.mxu0 0.0
    %541 = vmatpush1.msra.mxu0 0.0
    %542 = vmatprep.subr.mxu0 0.0
    %543 = vmatpush1.msra.mxu0 0.0
    %544 = vmatprep.subr.mxu0 0.0
    %545 = vmatpush1.msra.mxu0 0.0
    %546 = vmatprep.subr.mxu0 0.0
    %547 = vmatpush1.msra.mxu0 0.0
    %548 = vmatprep.subr.mxu0 0.0
    %549 = vmatpush1.msra.mxu0 0.0
    %550 = vmatprep.subr.mxu0 0.0
    %551 = vmatpush1.msra.mxu0 0.0
    %552 = vmatprep.subr.mxu0 0.0
    %553 = vmatpush1.msra.mxu0 0.0
    %554 = vmatprep.subr.mxu0 0.0
    %555 = vmatpush1.msra.mxu0 0.0
    %556 = vmatprep.subr.mxu0 0.0
    %557 = vmatpush1.msra.mxu0 0.0
    %558 = vmatprep.mubr.f32.mxu0 0.0
    %559 = vmatmul.mubr.f32.gmra.mrb[0].mxu0 %v242
    %v560 = vpop.f32.mrb[0].mxu0
    %v561 = vadd.f32 %v492, %v560
    %v562 = vpop.f32.mrb[0].mxu0
    %563 = vdwg.mxu0
    %v564 = vld [vmem:[%s1] sm:$0xff]
    %v565 = vld [vmem:[%s1 + $0x8] sm:$0xff]
    %v566 = vld [vmem:[%s1 + $0x10] sm:$0xff]
    %v567 = vld [vmem:[%s1 + $0x18] sm:$0xff]
    %v568 = vld [vmem:[%s1 + $0x20] sm:$0xff]
    %v569 = vld [vmem:[%s1 + $0x28] sm:$0xff]
    %v570 = vld [vmem:[%s1 + $0x30] sm:$0xff]
    %v571 = vld [vmem:[%s1 + $0x38] sm:$0xff]
    %v572 = vld [vmem:[%s3] sm:$0xff]
    %v573 = vld [vmem:[%s3 + $0x8] sm:$0xff]
    %v574 = vld [vmem:[%s3 + $0x10] sm:$0xff]
    %v575 = vld [vmem:[%s3 + $0x18] sm:$0xff]
    %v576 = vld [vmem:[%s3 + $0x20] sm:$0xff]
    %v577 = vld [vmem:[%s3 + $0x28] sm:$0xff]
    %v578 = vld [vmem:[%s3 + $0x30] sm:$0xff]
    %v579 = vld [vmem:[%s3 + $0x38] sm:$0xff]
    %v580 = vld [vmem:[%s5] sm:$0xff]
    %v581 = vld [vmem:[%s5 + $0x8] sm:$0xff]
    %v582 = vld [vmem:[%s5 + $0x10] sm:$0xff]
    %v583 = vld [vmem:[%s5 + $0x18] sm:$0xff]
    %v584 = vld [vmem:[%s5 + $0x20] sm:$0xff]
    %v585 = vld [vmem:[%s5 + $0x28] sm:$0xff]
    %v586 = vld [vmem:[%s5 + $0x30] sm:$0xff]
    %v587 = vld [vmem:[%s5 + $0x38] sm:$0xff]
    %v588 = vld [vmem:[%s7] sm:$0xff]
    %v589 = vld [vmem:[%s7 + $0x8] sm:$0xff]
    %v590 = vld [vmem:[%s7 + $0x10] sm:$0xff]
    %v591 = vld [vmem:[%s7 + $0x18] sm:$0xff]
    %v592 = vld [vmem:[%s7 + $0x20] sm:$0xff]
    %v593 = vld [vmem:[%s7 + $0x28] sm:$0xff]
    %v594 = vld [vmem:[%s7 + $0x30] sm:$0xff]
    %v595 = vld [vmem:[%s7 + $0x38] sm:$0xff]
    %v596 = vld [vmem:[%s45] sm:$0xff]
    %v597 = vld [vmem:[%s45 + $0x8] sm:$0xff]
    %v598 = vld [vmem:[%s45 + $0x10] sm:$0xff]
    %v599 = vld [vmem:[%s45 + $0x18] sm:$0xff]
    %v600 = vld [vmem:[%s47] sm:$0xf]
    %v601 = vpack.c.bf16 %v589, %v588
    %v602 = vpack.c.bf16 %v591, %v590
    %v603 = vpack.c.bf16 %v593, %v592
    %v604 = vpack.c.bf16 %v595, %v594
    %v605 = vld [vmem:[%s35] sm:$0xf]
    %v606 = vld [vmem:[%s37] sm:$0x1]
    %v608 = vlaneseq
    %v609 = vshrl.u32 %v608, 7
    %v610 = vsub.s32 0, %v609
    %v611 = vrot.slane %v606, %v610
    %v614 = vsel %vm139, %v601, 0
    %v617 = vsel %vm139, %v602, 0
    %v620 = vsel %vm139, %v603, 0
    %v623 = vsel %vm139, %v604, 0
    %vm625 = vcmask 1043456
    %v627 = vsel %vm625, %v605, 0
    %629 = vmatprep.subr.bf16.mxu0 0
    %630 = vmatpush1.bf16.msra.mxu0 %v627
    %631 = vmatprep.subr.bf16.mxu0 0
    %632 = vmatpush1.bf16.msra.mxu0 0
    %633 = vmatprep.subr.bf16.mxu0 0
    %634 = vmatpush1.bf16.msra.mxu0 0
    %635 = vmatprep.subr.bf16.mxu0 0
    %636 = vmatpush1.bf16.msra.mxu0 0
    %637 = vmatprep.subr.bf16.mxu0 0
    %638 = vmatpush1.bf16.msra.mxu0 0
    %639 = vmatprep.subr.bf16.mxu0 0
    %640 = vmatpush1.bf16.msra.mxu0 0
    %641 = vmatprep.subr.bf16.mxu0 0
    %642 = vmatpush1.bf16.msra.mxu0 0
    %643 = vmatprep.subr.bf16.mxu0 0
    %644 = vmatpush1.bf16.msra.mxu0 0
    %645 = vmatprep.subr.bf16.mxu0 0
    %646 = vmatpush1.bf16.msra.mxu0 0
    %647 = vmatprep.subr.bf16.mxu0 0
    %648 = vmatpush1.bf16.msra.mxu0 0
    %649 = vmatprep.subr.bf16.mxu0 0
    %650 = vmatpush1.bf16.msra.mxu0 0
    %651 = vmatprep.subr.bf16.mxu0 0
    %652 = vmatpush1.bf16.msra.mxu0 0
    %653 = vmatprep.subr.bf16.mxu0 0
    %654 = vmatpush1.bf16.msra.mxu0 0
    %655 = vmatprep.subr.bf16.mxu0 0
    %656 = vmatpush1.bf16.msra.mxu0 0
    %657 = vmatprep.subr.bf16.mxu0 0
    %658 = vmatpush1.bf16.msra.mxu0 0
    %659 = vmatprep.subr.bf16.mxu0 0
    %660 = vmatpush1.bf16.msra.mxu0 0
    %661 = vmatprep.mubr.bf16.mxu0 0
    %662 = vmatmul.mubr.bf16.gmra.mrb[0].mxu0 %v614
    %v663 = vpop.f32.mrb[0].mxu0
    %v664 = vadd.f32 %v611, %v663
    %v665 = vpop.f32.mrb[0].mxu0
    %v666 = vpop.f32.mrb[0].mxu0
    %v667 = vadd.f32 %v611, %v666
    %v668 = vpop.f32.mrb[0].mxu0
    %669 = vmatprep.mubr.bf16.mxu0 0
    %670 = vmatmul.mubr.bf16.gmra.mrb[0].mxu0 %v617
    %v671 = vpop.f32.mrb[0].mxu0
    %v672 = vadd.f32 %v611, %v671
    %v673 = vpop.f32.mrb[0].mxu0
    %v674 = vpop.f32.mrb[0].mxu0
    %v675 = vadd.f32 %v611, %v674
    %v676 = vpop.f32.mrb[0].mxu0
    %677 = vmatprep.mubr.bf16.mxu0 0
    %678 = vmatmul.mubr.bf16.gmra.mrb[0].mxu0 %v620
    %v679 = vpop.f32.mrb[0].mxu0
    %v680 = vadd.f32 %v611, %v679
    %v681 = vpop.f32.mrb[0].mxu0
    %v682 = vpop.f32.mrb[0].mxu0
    %v683 = vadd.f32 %v611, %v682
    %v684 = vpop.f32.mrb[0].mxu0
    %685 = vmatprep.mubr.bf16.mxu0 0
    %686 = vmatmul.mubr.bf16.gmra.mrb[0].mxu0 %v623
    %v687 = vpop.f32.mrb[0].mxu0
    %v688 = vadd.f32 %v611, %v687
    %v689 = vpop.f32.mrb[0].mxu0
    %v690 = vpop.f32.mrb[0].mxu0
    %v691 = vadd.f32 %v611, %v690
    %v692 = vpop.f32.mrb[0].mxu0
    %693 = vdwg.mxu0
    %v694 = vmax.f32 %v664, 0.0
    %v695 = vmax.f32 %v667, 0.0
    %v696 = vmax.f32 %v672, 0.0
    %v697 = vmax.f32 %v675, 0.0
    %v698 = vmax.f32 %v680, 0.0
    %v699 = vmax.f32 %v683, 0.0
    %v700 = vmax.f32 %v688, 0.0
    %v701 = vmax.f32 %v691, 0.0
    %v702 = vsub.f32 0.0, %v694
    %v703 = vsub.f32 0.0, %v695
    %v704 = vsub.f32 0.0, %v696
    %v705 = vsub.f32 0.0, %v697
    %v706 = vsub.f32 0.0, %v698
    %v707 = vsub.f32 0.0, %v699
    %v708 = vsub.f32 0.0, %v700
    %v709 = vsub.f32 0.0, %v701
    %v710 = vmul.f32 %v702, 1.442695
    %v711 = vpow.pop %v710
    %v712 = vmul.f32 %v703, 1.442695
    %v713 = vpow.pop %v712
    %v714 = vmul.f32 %v704, 1.442695
    %v715 = vpow.pop %v714
    %v716 = vmul.f32 %v705, 1.442695
    %v717 = vpow.pop %v716
    %v718 = vmul.f32 %v706, 1.442695
    %v719 = vpow.pop %v718
    %v720 = vmul.f32 %v707, 1.442695
    %v721 = vpow.pop %v720
    %v722 = vmul.f32 %v708, 1.442695
    %v723 = vpow.pop %v722
    %v724 = vmul.f32 %v709, 1.442695
    %v725 = vpow.pop %v724
    %v726 = vpack.c.bf16 %v565, %v564
    %v727 = vpack.c.bf16 %v567, %v566
    %v728 = vpack.c.bf16 %v569, %v568
    %v729 = vpack.c.bf16 %v571, %v570
    %v730 = vld [vmem:[%s43] sm:$0xf]
    %v732 = vsel %vm139, %v726, 0
    %v735 = vsel %vm139, %v727, 0
    %v738 = vsel %vm139, %v728, 0
    %v741 = vsel %vm139, %v729, 0
    %v744 = vsel %vm625, %v730, 0
    %746 = vmatprep.subr.bf16.mxu0 0
    %747 = vmatpush1.bf16.msra.mxu0 %v744
    %748 = vmatprep.subr.bf16.mxu0 0
    %749 = vmatpush1.bf16.msra.mxu0 0
    %750 = vmatprep.subr.bf16.mxu0 0
    %751 = vmatpush1.bf16.msra.mxu0 0
    %752 = vmatprep.subr.bf16.mxu0 0
    %753 = vmatpush1.bf16.msra.mxu0 0
    %754 = vmatprep.subr.bf16.mxu0 0
    %755 = vmatpush1.bf16.msra.mxu0 0
    %756 = vmatprep.subr.bf16.mxu0 0
    %757 = vmatpush1.bf16.msra.mxu0 0
    %758 = vmatprep.subr.bf16.mxu0 0
    %759 = vmatpush1.bf16.msra.mxu0 0
    %760 = vmatprep.subr.bf16.mxu0 0
    %761 = vmatpush1.bf16.msra.mxu0 0
    %762 = vmatprep.subr.bf16.mxu0 0
    %763 = vmatpush1.bf16.msra.mxu0 0
    %764 = vmatprep.subr.bf16.mxu0 0
    %765 = vmatpush1.bf16.msra.mxu0 0
    %766 = vmatprep.subr.bf16.mxu0 0
    %767 = vmatpush1.bf16.msra.mxu0 0
    %768 = vmatprep.subr.bf16.mxu0 0
    %769 = vmatpush1.bf16.msra.mxu0 0
    %770 = vmatprep.subr.bf16.mxu0 0
    %771 = vmatpush1.bf16.msra.mxu0 0
    %772 = vmatprep.subr.bf16.mxu0 0
    %773 = vmatpush1.bf16.msra.mxu0 0
    %774 = vmatprep.subr.bf16.mxu0 0
    %775 = vmatpush1.bf16.msra.mxu0 0
    %776 = vmatprep.subr.bf16.mxu0 0
    %777 = vmatpush1.bf16.msra.mxu0 0
    %778 = vmatprep.mubr.bf16.mxu0 0
    %779 = vmatmul.mubr.bf16.gmra.mrb[0].mxu0 %v732
    %v780 = vpop.f32.mrb[0].mxu0
    %v781 = vadd.f32 0.0, %v780
    %v782 = vpop.f32.mrb[0].mxu0
    %v783 = vpop.f32.mrb[0].mxu0
    %v784 = vadd.f32 0.0, %v783
    %v785 = vpop.f32.mrb[0].mxu0
    %786 = vmatprep.mubr.bf16.mxu0 0
    %787 = vmatmul.mubr.bf16.gmra.mrb[0].mxu0 %v735
    %v788 = vpop.f32.mrb[0].mxu0
    %v789 = vadd.f32 0.0, %v788
    %v790 = vpop.f32.mrb[0].mxu0
    %v791 = vpop.f32.mrb[0].mxu0
    %v792 = vadd.f32 0.0, %v791
    %v793 = vpop.f32.mrb[0].mxu0
    %794 = vmatprep.mubr.bf16.mxu0 0
    %795 = vmatmul.mubr.bf16.gmra.mrb[0].mxu0 %v738
    %v796 = vpop.f32.mrb[0].mxu0
    %v797 = vadd.f32 0.0, %v796
    %v798 = vpop.f32.mrb[0].mxu0
    %v799 = vpop.f32.mrb[0].mxu0
    %v800 = vadd.f32 0.0, %v799
    %v801 = vpop.f32.mrb[0].mxu0
    %802 = vmatprep.mubr.bf16.mxu0 0
    %803 = vmatmul.mubr.bf16.gmra.mrb[0].mxu0 %v741
    %v804 = vpop.f32.mrb[0].mxu0
    %v805 = vadd.f32 0.0, %v804
    %v806 = vpop.f32.mrb[0].mxu0
    %v807 = vpop.f32.mrb[0].mxu0
    %v808 = vadd.f32 0.0, %v807
    %v809 = vpop.f32.mrb[0].mxu0
    %810 = vdwg.mxu0
    %v811 = vpack.c.bf16 %v573, %v572
    %v812 = vpack.c.bf16 %v575, %v574
    %v813 = vpack.c.bf16 %v577, %v576
    %v814 = vpack.c.bf16 %v579, %v578
    %v815 = vld [vmem:[%s49] sm:$0xf]
    %v816 = vld [vmem:[%s51] sm:$0x1]
    %v818 = vlaneseq
    %v819 = vshrl.u32 %v818, 7
    %v820 = vsub.s32 0, %v819
    %v821 = vrot.slane %v816, %v820
    %v824 = vsel %vm139, %v811, 0
    %v827 = vsel %vm139, %v812, 0
    %v830 = vsel %vm139, %v813, 0
    %v833 = vsel %vm139, %v814, 0
    %v836 = vsel %vm625, %v815, 0
    %838 = vmatprep.subr.bf16.mxu0 0
    %839 = vmatpush1.bf16.msra.mxu0 %v836
    %840 = vmatprep.subr.bf16.mxu0 0
    %841 = vmatpush1.bf16.msra.mxu0 0
    %842 = vmatprep.subr.bf16.mxu0 0
    %843 = vmatpush1.bf16.msra.mxu0 0
    %844 = vmatprep.subr.bf16.mxu0 0
    %845 = vmatpush1.bf16.msra.mxu0 0
    %846 = vmatprep.subr.bf16.mxu0 0
    %847 = vmatpush1.bf16.msra.mxu0 0
    %848 = vmatprep.subr.bf16.mxu0 0
    %849 = vmatpush1.bf16.msra.mxu0 0
    %850 = vmatprep.subr.bf16.mxu0 0
    %851 = vmatpush1.bf16.msra.mxu0 0
    %852 = vmatprep.subr.bf16.mxu0 0
    %853 = vmatpush1.bf16.msra.mxu0 0
    %854 = vmatprep.subr.bf16.mxu0 0
    %855 = vmatpush1.bf16.msra.mxu0 0
    %856 = vmatprep.subr.bf16.mxu0 0
    %857 = vmatpush1.bf16.msra.mxu0 0
    %858 = vmatprep.subr.bf16.mxu0 0
    %859 = vmatpush1.bf16.msra.mxu0 0
    %860 = vmatprep.subr.bf16.mxu0 0
    %861 = vmatpush1.bf16.msra.mxu0 0
    %862 = vmatprep.subr.bf16.mxu0 0
    %863 = vmatpush1.bf16.msra.mxu0 0
    %864 = vmatprep.subr.bf16.mxu0 0
    %865 = vmatpush1.bf16.msra.mxu0 0
    %866 = vmatprep.subr.bf16.mxu0 0
    %867 = vmatpush1.bf16.msra.mxu0 0
    %868 = vmatprep.subr.bf16.mxu0 0
    %869 = vmatpush1.bf16.msra.mxu0 0
    %870 = vmatprep.mubr.bf16.mxu0 0
    %871 = vmatmul.mubr.bf16.gmra.mrb[0].mxu0 %v824
    %v872 = vpop.f32.mrb[0].mxu0
    %v873 = vadd.f32 %v821, %v872
    %v874 = vpop.f32.mrb[0].mxu0
    %v875 = vpop.f32.mrb[0].mxu0
    %v876 = vadd.f32 %v821, %v875
    %v877 = vpop.f32.mrb[0].mxu0
    %878 = vmatprep.mubr.bf16.mxu0 0
    %879 = vmatmul.mubr.bf16.gmra.mrb[0].mxu0 %v827
    %v880 = vpop.f32.mrb[0].mxu0
    %v881 = vadd.f32 %v821, %v880
    %v882 = vpop.f32.mrb[0].mxu0
    %v883 = vpop.f32.mrb[0].mxu0
    %v884 = vadd.f32 %v821, %v883
    %v885 = vpop.f32.mrb[0].mxu0
    %886 = vmatprep.mubr.bf16.mxu0 0
    %887 = vmatmul.mubr.bf16.gmra.mrb[0].mxu0 %v830
    %v888 = vpop.f32.mrb[0].mxu0
    %v889 = vadd.f32 %v821, %v888
    %v890 = vpop.f32.mrb[0].mxu0
    %v891 = vpop.f32.mrb[0].mxu0
    %v892 = vadd.f32 %v821, %v891
    %v893 = vpop.f32.mrb[0].mxu0
    %894 = vmatprep.mubr.bf16.mxu0 0
    %895 = vmatmul.mubr.bf16.gmra.mrb[0].mxu0 %v833
    %v896 = vpop.f32.mrb[0].mxu0
    %v897 = vadd.f32 %v821, %v896
    %v898 = vpop.f32.mrb[0].mxu0
    %v899 = vpop.f32.mrb[0].mxu0
    %v900 = vadd.f32 %v821, %v899
    %v901 = vpop.f32.mrb[0].mxu0
    %902 = vdwg.mxu0
    %v903 = vmul.f32 %v485, %v711
    %v904 = vpack.c.bf16 %v903, %v903
    %v909 = vunpack.c.l.b16 %v596
    %v910 = vunpack.c.h.b16 %v596
    %v911 = vunpack.c.l.b16 %v597
    %v912 = vunpack.c.h.b16 %v597
    %v913 = vunpack.c.l.b16 %v598
    %v914 = vunpack.c.h.b16 %v598
    %v915 = vunpack.c.l.b16 %v599
    %v916 = vunpack.c.h.b16 %v599
    %v917 = vpack.c.b16 %v911, %v909
    %v918 = vpack.c.b16 %v912, %v910
    %v919 = vpack.c.b16 %v915, %v913
    %v920 = vpack.c.b16 %v916, %v914
    %v926 = vsel %vm326, %v904, 0
    %928 = vmatprep.subr.bf16.mxu0 %v918
    %929 = vmatpush1.bf16.msra.mxu0 %v917
    %930 = vmatprep.subr.bf16.mxu0 %v920
    %931 = vmatpush1.bf16.msra.mxu0 %v919
    %932 = vmatprep.subr.bf16.mxu0 0
    %933 = vmatpush1.bf16.msra.mxu0 0
    %934 = vmatprep.subr.bf16.mxu0 0
    %935 = vmatpush1.bf16.msra.mxu0 0
    %936 = vmatprep.subr.bf16.mxu0 0
    %937 = vmatpush1.bf16.msra.mxu0 0
    %938 = vmatprep.subr.bf16.mxu0 0
    %939 = vmatpush1.bf16.msra.mxu0 0
    %940 = vmatprep.subr.bf16.mxu0 0
    %941 = vmatpush1.bf16.msra.mxu0 0
    %942 = vmatprep.subr.bf16.mxu0 0
    %943 = vmatpush1.bf16.msra.mxu0 0
    %944 = vmatprep.subr.bf16.mxu0 0
    %945 = vmatpush1.bf16.msra.mxu0 0
    %946 = vmatprep.subr.bf16.mxu0 0
    %947 = vmatpush1.bf16.msra.mxu0 0
    %948 = vmatprep.subr.bf16.mxu0 0
    %949 = vmatpush1.bf16.msra.mxu0 0
    %950 = vmatprep.subr.bf16.mxu0 0
    %951 = vmatpush1.bf16.msra.mxu0 0
    %952 = vmatprep.subr.bf16.mxu0 0
    %953 = vmatpush1.bf16.msra.mxu0 0
    %954 = vmatprep.subr.bf16.mxu0 0
    %955 = vmatpush1.bf16.msra.mxu0 0
    %956 = vmatprep.subr.bf16.mxu0 0
    %957 = vmatpush1.bf16.msra.mxu0 0
    %958 = vmatprep.subr.bf16.mxu0 0
    %959 = vmatpush1.bf16.msra.mxu0 0
    %960 = vmatprep.mubr.bf16.mxu0 0
    %961 = vmatmul.mubr.bf16.gmra.mrb[0].mxu0 %v926
    %v962 = vpop.f32.mrb[0].mxu0
    %v963 = vadd.f32 0.0, %v962
    %v964 = vpop.f32.mrb[0].mxu0
    %v965 = vadd.f32 0.0, %v964
    %v966 = vpop.f32.mrb[0].mxu0
    %v967 = vpop.f32.mrb[0].mxu0
    %968 = vdwg.mxu0
    %v969 = vadd.f32 %v965, %v781
    %v970 = vadd.f32 %v969, %v561
    %v971 = vsub.f32 %v564, %v970
    %v972 = vand.u32 2147483647, %v971
    %v973 = vmul.f32 %v972, %v580
    %v974 = vadd.f32 %v973, 0.0
    %v975 = vmul.f32 %v572, %v564
    %v976 = vsub.f32 1.0, %v572
    %v977 = vmul.f32 %v976, %v970
    %v978 = vadd.f32 %v975, %v977
    %v979 = vpack.c.bf16 %v978, %v978
    %v981 = vsel %vm139, %v979, 0
    %v984 = vsel %vm625, %v600, 0
    %986 = vmatprep.subr.bf16.mxu0 0
    %987 = vmatpush1.bf16.msra.mxu0 %v984
    %988 = vmatprep.subr.bf16.mxu0 0
    %989 = vmatpush1.bf16.msra.mxu0 0
    %990 = vmatprep.subr.bf16.mxu0 0
    %991 = vmatpush1.bf16.msra.mxu0 0
    %992 = vmatprep.subr.bf16.mxu0 0
    %993 = vmatpush1.bf16.msra.mxu0 0
    %994 = vmatprep.subr.bf16.mxu0 0
    %995 = vmatpush1.bf16.msra.mxu0 0
    %996 = vmatprep.subr.bf16.mxu0 0
    %997 = vmatpush1.bf16.msra.mxu0 0
    %998 = vmatprep.subr.bf16.mxu0 0
    %999 = vmatpush1.bf16.msra.mxu0 0
    %1000 = vmatprep.subr.bf16.mxu0 0
    %1001 = vmatpush1.bf16.msra.mxu0 0
    %1002 = vmatprep.subr.bf16.mxu0 0
    %1003 = vmatpush1.bf16.msra.mxu0 0
    %1004 = vmatprep.subr.bf16.mxu0 0
    %1005 = vmatpush1.bf16.msra.mxu0 0
    %1006 = vmatprep.subr.bf16.mxu0 0
    %1007 = vmatpush1.bf16.msra.mxu0 0
    %1008 = vmatprep.subr.bf16.mxu0 0
    %1009 = vmatpush1.bf16.msra.mxu0 0
    %1010 = vmatprep.subr.bf16.mxu0 0
    %1011 = vmatpush1.bf16.msra.mxu0 0
    %1012 = vmatprep.subr.bf16.mxu0 0
    %1013 = vmatpush1.bf16.msra.mxu0 0
    %1014 = vmatprep.subr.bf16.mxu0 0
    %1015 = vmatpush1.bf16.msra.mxu0 0
    %1016 = vmatprep.subr.bf16.mxu0 0
    %1017 = vmatpush1.bf16.msra.mxu0 0
    %1018 = vmatprep.mubr.bf16.mxu0 0
    %1019 = vmatmul.mubr.bf16.gmra.mrb[0].mxu0 %v981
    %v1020 = vpop.f32.mrb[0].mxu0
    %v1021 = vadd.f32 %v873, %v1020
    %v1022 = vpop.f32.mrb[0].mxu0
    %v1023 = vpop.f32.mrb[0].mxu0
    %v1024 = vpop.f32.mrb[0].mxu0
    %1025 = vdwg.mxu0
    %v1026 = vadd.f32 %v1021, %v963
    %v1027 = vxor.u32 %v1026, 2147483648
    %v1028 = vmul.f32 %v1027, 1.442695
    %v1029 = vpow.pop %v1028
    %v1030 = vadd.f32 %v1029, 1.0
    %v1031 = vrcp.pop %v1030
    %v1032 = vmul.f32 1.0, %v1031
    %v1033 = vtanh.pop %v1026
    %v1034 = vmul.f32 %v1032, 0.0
    %1036 = vrot.lane.b32.xlu0 %v1033, 32
    %v1037 = vpop.permute.xlu0 %1036
    %v1039 = vmul.f32 %v1032, %v1037
    %1041 = vrot.lane.b32.xlu0 %v1039, 32
    %v1042 = vpop.permute.xlu0 %1041
    %v1044 = vadd.f32 %v1034, %v1042
    %v1045 = vtanh.pop %v1044
    %1047 = vrot.lane.b32.xlu0 %v1045, 32
    %v1048 = vpop.permute.xlu0 %1047
    %v1050 = vmul.f32 %v1032, %v1048
    %1052 = vrot.lane.b32.xlu0 %v713, 64
    %v1053 = vpop.permute.xlu0 %1052
    %v1055 = vmul.f32 %v1050, %v1053
    %v1056 = vpack.c.bf16 %v1055, %v1055
    %1058 = vrot.lane.b32.xlu0 %v1056, 64
    %v1059 = vpop.permute.xlu0 %1058
    %v1061 = vsel %vm326, %v1059, 0
    %1063 = vmatprep.subr.bf16.mxu0 %v918
    %1064 = vmatpush1.bf16.msra.mxu0 %v917
    %1065 = vmatprep.subr.bf16.mxu0 %v920
    %1066 = vmatpush1.bf16.msra.mxu0 %v919
    %1067 = vmatprep.subr.bf16.mxu0 0
    %1068 = vmatpush1.bf16.msra.mxu0 0
    %1069 = vmatprep.subr.bf16.mxu0 0
    %1070 = vmatpush1.bf16.msra.mxu0 0
    %1071 = vmatprep.subr.bf16.mxu0 0
    %1072 = vmatpush1.bf16.msra.mxu0 0
    %1073 = vmatprep.subr.bf16.mxu0 0
    %1074 = vmatpush1.bf16.msra.mxu0 0
    %1075 = vmatprep.subr.bf16.mxu0 0
    %1076 = vmatpush1.bf16.msra.mxu0 0
    %1077 = vmatprep.subr.bf16.mxu0 0
    %1078 = vmatpush1.bf16.msra.mxu0 0
    %1079 = vmatprep.subr.bf16.mxu0 0
    %1080 = vmatpush1.bf16.msra.mxu0 0
    %1081 = vmatprep.subr.bf16.mxu0 0
    %1082 = vmatpush1.bf16.msra.mxu0 0
    %1083 = vmatprep.subr.bf16.mxu0 0
    %1084 = vmatpush1.bf16.msra.mxu0 0
    %1085 = vmatprep.subr.bf16.mxu0 0
    %1086 = vmatpush1.bf16.msra.mxu0 0
    %1087 = vmatprep.subr.bf16.mxu0 0
    %1088 = vmatpush1.bf16.msra.mxu0 0
    %1089 = vmatprep.subr.bf16.mxu0 0
    %1090 = vmatpush1.bf16.msra.mxu0 0
    %1091 = vmatprep.subr.bf16.mxu0 0
    %1092 = vmatpush1.bf16.msra.mxu0 0
    %1093 = vmatprep.subr.bf16.mxu0 0
    %1094 = vmatpush1.bf16.msra.mxu0 0
    %1095 = vmatprep.mubr.bf16.mxu0 0
    %1096 = vmatmul.mubr.bf16.gmra.mrb[0].mxu0 %v1061
    %v1097 = vpop.f32.mrb[0].mxu0
    %v1098 = vadd.f32 0.0, %v1097
    %v1099 = vpop.f32.mrb[0].mxu0
    %v1100 = vadd.f32 0.0, %v1099
    %v1101 = vpop.f32.mrb[0].mxu0
    %v1102 = vpop.f32.mrb[0].mxu0
    %1103 = vdwg.mxu0
    %v1104 = vadd.f32 %v1100, %v784
    %v1105 = vadd.f32 %v1104, %v561
    %v1106 = vsub.f32 %v565, %v1105
    %v1107 = vand.u32 2147483647, %v1106
    %v1108 = vmul.f32 %v1107, %v581
    %v1109 = vadd.f32 %v974, %v1108
    %v1110 = vmul.f32 %v573, %v565
    %v1111 = vsub.f32 1.0, %v573
    %v1112 = vmul.f32 %v1111, %v1105
    %v1113 = vadd.f32 %v1110, %v1112
    %v1114 = vpack.c.bf16 %v1113, %v1113
    %v1116 = vsel %vm139, %v1114, 0
    %1118 = vmatprep.subr.bf16.mxu0 0
    %1119 = vmatpush1.bf16.msra.mxu0 %v984
    %1120 = vmatprep.subr.bf16.mxu0 0
    %1121 = vmatpush1.bf16.msra.mxu0 0
    %1122 = vmatprep.subr.bf16.mxu0 0
    %1123 = vmatpush1.bf16.msra.mxu0 0
    %1124 = vmatprep.subr.bf16.mxu0 0
    %1125 = vmatpush1.bf16.msra.mxu0 0
    %1126 = vmatprep.subr.bf16.mxu0 0
    %1127 = vmatpush1.bf16.msra.mxu0 0
    %1128 = vmatprep.subr.bf16.mxu0 0
    %1129 = vmatpush1.bf16.msra.mxu0 0
    %1130 = vmatprep.subr.bf16.mxu0 0
    %1131 = vmatpush1.bf16.msra.mxu0 0
    %1132 = vmatprep.subr.bf16.mxu0 0
    %1133 = vmatpush1.bf16.msra.mxu0 0
    %1134 = vmatprep.subr.bf16.mxu0 0
    %1135 = vmatpush1.bf16.msra.mxu0 0
    %1136 = vmatprep.subr.bf16.mxu0 0
    %1137 = vmatpush1.bf16.msra.mxu0 0
    %1138 = vmatprep.subr.bf16.mxu0 0
    %1139 = vmatpush1.bf16.msra.mxu0 0
    %1140 = vmatprep.subr.bf16.mxu0 0
    %1141 = vmatpush1.bf16.msra.mxu0 0
    %1142 = vmatprep.subr.bf16.mxu0 0
    %1143 = vmatpush1.bf16.msra.mxu0 0
    %1144 = vmatprep.subr.bf16.mxu0 0
    %1145 = vmatpush1.bf16.msra.mxu0 0
    %1146 = vmatprep.subr.bf16.mxu0 0
    %1147 = vmatpush1.bf16.msra.mxu0 0
    %1148 = vmatprep.subr.bf16.mxu0 0
    %1149 = vmatpush1.bf16.msra.mxu0 0
    %1150 = vmatprep.mubr.bf16.mxu0 0
    %1151 = vmatmul.mubr.bf16.gmra.mrb[0].mxu0 %v1116
    %v1152 = vpop.f32.mrb[0].mxu0
    %v1153 = vadd.f32 %v876, %v1152
    %v1154 = vpop.f32.mrb[0].mxu0
    %v1155 = vpop.f32.mrb[0].mxu0
    %v1156 = vpop.f32.mrb[0].mxu0
    %1157 = vdwg.mxu0
    %v1158 = vadd.f32 %v1153, %v1098
    %v1159 = vxor.u32 %v1158, 2147483648
    %v1160 = vmul.f32 %v1159, 1.442695
    %v1161 = vpow.pop %v1160
    %v1162 = vadd.f32 %v1161, 1.0
    %v1163 = vrcp.pop %v1162
    %v1164 = vmul.f32 1.0, %v1163
    %v1165 = vtanh.pop %v1158
    %v1166 = vmul.f32 %v1164, %v1044
    %1168 = vrot.lane.b32.xlu0 %v1165, 32
    %v1169 = vpop.permute.xlu0 %1168
    %v1171 = vmul.f32 %v1164, %v1169
    %1173 = vrot.lane.b32.xlu0 %v1171, 32
    %v1174 = vpop.permute.xlu0 %1173
    %v1176 = vadd.f32 %v1166, %v1174
    %v1177 = vtanh.pop %v1176
    %1179 = vrot.lane.b32.xlu0 %v1177, 32
    %v1180 = vpop.permute.xlu0 %1179
    %v1182 = vmul.f32 %v1164, %v1180
    %1184 = vrot.lane.b32.xlu0 %v715, 64
    %v1185 = vpop.permute.xlu0 %1184
    %v1187 = vmul.f32 %v1182, %v1185
    %v1188 = vpack.c.bf16 %v1187, %v1187
    %1190 = vrot.lane.b32.xlu0 %v1188, 64
    %v1191 = vpop.permute.xlu0 %1190
    %v1193 = vsel %vm326, %v1191, 0
    %1195 = vmatprep.subr.bf16.mxu0 %v918
    %1196 = vmatpush1.bf16.msra.mxu0 %v917
    %1197 = vmatprep.subr.bf16.mxu0 %v920
    %1198 = vmatpush1.bf16.msra.mxu0 %v919
    %1199 = vmatprep.subr.bf16.mxu0 0
    %1200 = vmatpush1.bf16.msra.mxu0 0
    %1201 = vmatprep.subr.bf16.mxu0 0
    %1202 = vmatpush1.bf16.msra.mxu0 0
    %1203 = vmatprep.subr.bf16.mxu0 0
    %1204 = vmatpush1.bf16.msra.mxu0 0
    %1205 = vmatprep.subr.bf16.mxu0 0
    %1206 = vmatpush1.bf16.msra.mxu0 0
    %1207 = vmatprep.subr.bf16.mxu0 0
    %1208 = vmatpush1.bf16.msra.mxu0 0
    %1209 = vmatprep.subr.bf16.mxu0 0
    %1210 = vmatpush1.bf16.msra.mxu0 0
    %1211 = vmatprep.subr.bf16.mxu0 0
    %1212 = vmatpush1.bf16.msra.mxu0 0
    %1213 = vmatprep.subr.bf16.mxu0 0
    %1214 = vmatpush1.bf16.msra.mxu0 0
    %1215 = vmatprep.subr.bf16.mxu0 0
    %1216 = vmatpush1.bf16.msra.mxu0 0
    %1217 = vmatprep.subr.bf16.mxu0 0
    %1218 = vmatpush1.bf16.msra.mxu0 0
    %1219 = vmatprep.subr.bf16.mxu0 0
    %1220 = vmatpush1.bf16.msra.mxu0 0
    %1221 = vmatprep.subr.bf16.mxu0 0
    %1222 = vmatpush1.bf16.msra.mxu0 0
    %1223 = vmatprep.subr.bf16.mxu0 0
    %1224 = vmatpush1.bf16.msra.mxu0 0
    %1225 = vmatprep.subr.bf16.mxu0 0
    %1226 = vmatpush1.bf16.msra.mxu0 0
    %1227 = vmatprep.mubr.bf16.mxu0 0
    %1228 = vmatmul.mubr.bf16.gmra.mrb[0].mxu0 %v1193
    %v1229 = vpop.f32.mrb[0].mxu0
    %v1230 = vadd.f32 0.0, %v1229
    %v1231 = vpop.f32.mrb[0].mxu0
    %v1232 = vadd.f32 0.0, %v1231
    %v1233 = vpop.f32.mrb[0].mxu0
    %v1234 = vpop.f32.mrb[0].mxu0
    %1235 = vdwg.mxu0
    %v1236 = vadd.f32 %v1232, %v789
    %v1237 = vadd.f32 %v1236, %v561
    %v1238 = vsub.f32 %v566, %v1237
    %v1239 = vand.u32 2147483647, %v1238
    %v1240 = vmul.f32 %v1239, %v582
    %v1241 = vadd.f32 %v1109, %v1240
    %v1242 = vmul.f32 %v574, %v566
    %v1243 = vsub.f32 1.0, %v574
    %v1244 = vmul.f32 %v1243, %v1237
    %v1245 = vadd.f32 %v1242, %v1244
    %v1246 = vpack.c.bf16 %v1245, %v1245
    %v1248 = vsel %vm139, %v1246, 0
    %1250 = vmatprep.subr.bf16.mxu0 0
    %1251 = vmatpush1.bf16.msra.mxu0 %v984
    %1252 = vmatprep.subr.bf16.mxu0 0
    %1253 = vmatpush1.bf16.msra.mxu0 0
    %1254 = vmatprep.subr.bf16.mxu0 0
    %1255 = vmatpush1.bf16.msra.mxu0 0
    %1256 = vmatprep.subr.bf16.mxu0 0
    %1257 = vmatpush1.bf16.msra.mxu0 0
    %1258 = vmatprep.subr.bf16.mxu0 0
    %1259 = vmatpush1.bf16.msra.mxu0 0
    %1260 = vmatprep.subr.bf16.mxu0 0
    %1261 = vmatpush1.bf16.msra.mxu0 0
    %1262 = vmatprep.subr.bf16.mxu0 0
    %1263 = vmatpush1.bf16.msra.mxu0 0
    %1264 = vmatprep.subr.bf16.mxu0 0
    %1265 = vmatpush1.bf16.msra.mxu0 0
    %1266 = vmatprep.subr.bf16.mxu0 0
    %1267 = vmatpush1.bf16.msra.mxu0 0
    %1268 = vmatprep.subr.bf16.mxu0 0
    %1269 = vmatpush1.bf16.msra.mxu0 0
    %1270 = vmatprep.subr.bf16.mxu0 0
    %1271 = vmatpush1.bf16.msra.mxu0 0
    %1272 = vmatprep.subr.bf16.mxu0 0
    %1273 = vmatpush1.bf16.msra.mxu0 0
    %1274 = vmatprep.subr.bf16.mxu0 0
    %1275 = vmatpush1.bf16.msra.mxu0 0
    %1276 = vmatprep.subr.bf16.mxu0 0
    %1277 = vmatpush1.bf16.msra.mxu0 0
    %1278 = vmatprep.subr.bf16.mxu0 0
    %1279 = vmatpush1.bf16.msra.mxu0 0
    %1280 = vmatprep.subr.bf16.mxu0 0
    %1281 = vmatpush1.bf16.msra.mxu0 0
    %1282 = vmatprep.mubr.bf16.mxu0 0
    %1283 = vmatmul.mubr.bf16.gmra.mrb[0].mxu0 %v1248
    %v1284 = vpop.f32.mrb[0].mxu0
    %v1285 = vadd.f32 %v881, %v1284
    %v1286 = vpop.f32.mrb[0].mxu0
    %v1287 = vpop.f32.mrb[0].mxu0
    %v1288 = vpop.f32.mrb[0].mxu0
    %1289 = vdwg.mxu0
    %v1290 = vadd.f32 %v1285, %v1230
    %v1291 = vxor.u32 %v1290, 2147483648
    %v1292 = vmul.f32 %v1291, 1.442695
    %v1293 = vpow.pop %v1292
    %v1294 = vadd.f32 %v1293, 1.0
    %v1295 = vrcp.pop %v1294
    %v1296 = vmul.f32 1.0, %v1295
    %v1297 = vtanh.pop %v1290
    %v1298 = vmul.f32 %v1296, %v1176
    %1300 = vrot.lane.b32.xlu0 %v1297, 32
    %v1301 = vpop.permute.xlu0 %1300
    %v1303 = vmul.f32 %v1296, %v1301
    %1305 = vrot.lane.b32.xlu0 %v1303, 32
    %v1306 = vpop.permute.xlu0 %1305
    %v1308 = vadd.f32 %v1298, %v1306
    %v1309 = vtanh.pop %v1308
    %1311 = vrot.lane.b32.xlu0 %v1309, 32
    %v1312 = vpop.permute.xlu0 %1311
    %v1314 = vmul.f32 %v1296, %v1312
    %1316 = vrot.lane.b32.xlu0 %v717, 64
    %v1317 = vpop.permute.xlu0 %1316
    %v1319 = vmul.f32 %v1314, %v1317
    %v1320 = vpack.c.bf16 %v1319, %v1319
    %1322 = vrot.lane.b32.xlu0 %v1320, 64
    %v1323 = vpop.permute.xlu0 %1322
    %v1325 = vsel %vm326, %v1323, 0
    %1327 = vmatprep.subr.bf16.mxu0 %v918
    %1328 = vmatpush1.bf16.msra.mxu0 %v917
    %1329 = vmatprep.subr.bf16.mxu0 %v920
    %1330 = vmatpush1.bf16.msra.mxu0 %v919
    %1331 = vmatprep.subr.bf16.mxu0 0
    %1332 = vmatpush1.bf16.msra.mxu0 0
    %1333 = vmatprep.subr.bf16.mxu0 0
    %1334 = vmatpush1.bf16.msra.mxu0 0
    %1335 = vmatprep.subr.bf16.mxu0 0
    %1336 = vmatpush1.bf16.msra.mxu0 0
    %1337 = vmatprep.subr.bf16.mxu0 0
    %1338 = vmatpush1.bf16.msra.mxu0 0
    %1339 = vmatprep.subr.bf16.mxu0 0
    %1340 = vmatpush1.bf16.msra.mxu0 0
    %1341 = vmatprep.subr.bf16.mxu0 0
    %1342 = vmatpush1.bf16.msra.mxu0 0
    %1343 = vmatprep.subr.bf16.mxu0 0
    %1344 = vmatpush1.bf16.msra.mxu0 0
    %1345 = vmatprep.subr.bf16.mxu0 0
    %1346 = vmatpush1.bf16.msra.mxu0 0
    %1347 = vmatprep.subr.bf16.mxu0 0
    %1348 = vmatpush1.bf16.msra.mxu0 0
    %1349 = vmatprep.subr.bf16.mxu0 0
    %1350 = vmatpush1.bf16.msra.mxu0 0
    %1351 = vmatprep.subr.bf16.mxu0 0
    %1352 = vmatpush1.bf16.msra.mxu0 0
    %1353 = vmatprep.subr.bf16.mxu0 0
    %1354 = vmatpush1.bf16.msra.mxu0 0
    %1355 = vmatprep.subr.bf16.mxu0 0
    %1356 = vmatpush1.bf16.msra.mxu0 0
    %1357 = vmatprep.subr.bf16.mxu0 0
    %1358 = vmatpush1.bf16.msra.mxu0 0
    %1359 = vmatprep.mubr.bf16.mxu0 0
    %1360 = vmatmul.mubr.bf16.gmra.mrb[0].mxu0 %v1325
    %v1361 = vpop.f32.mrb[0].mxu0
    %v1362 = vadd.f32 0.0, %v1361
    %v1363 = vpop.f32.mrb[0].mxu0
    %v1364 = vadd.f32 0.0, %v1363
    %v1365 = vpop.f32.mrb[0].mxu0
    %v1366 = vpop.f32.mrb[0].mxu0
    %1367 = vdwg.mxu0
    %v1368 = vadd.f32 %v1364, %v792
    %v1369 = vadd.f32 %v1368, %v561
    %v1370 = vsub.f32 %v567, %v1369
    %v1371 = vand.u32 2147483647, %v1370
    %v1372 = vmul.f32 %v1371, %v583
    %v1373 = vadd.f32 %v1241, %v1372
    %v1374 = vmul.f32 %v575, %v567
    %v1375 = vsub.f32 1.0, %v575
    %v1376 = vmul.f32 %v1375, %v1369
    %v1377 = vadd.f32 %v1374, %v1376
    %v1378 = vpack.c.bf16 %v1377, %v1377
    %v1380 = vsel %vm139, %v1378, 0
    %1382 = vmatprep.subr.bf16.mxu0 0
    %1383 = vmatpush1.bf16.msra.mxu0 %v984
    %1384 = vmatprep.subr.bf16.mxu0 0
    %1385 = vmatpush1.bf16.msra.mxu0 0
    %1386 = vmatprep.subr.bf16.mxu0 0
    %1387 = vmatpush1.bf16.msra.mxu0 0
    %1388 = vmatprep.subr.bf16.mxu0 0
    %1389 = vmatpush1.bf16.msra.mxu0 0
    %1390 = vmatprep.subr.bf16.mxu0 0
    %1391 = vmatpush1.bf16.msra.mxu0 0
    %1392 = vmatprep.subr.bf16.mxu0 0
    %1393 = vmatpush1.bf16.msra.mxu0 0
    %1394 = vmatprep.subr.bf16.mxu0 0
    %1395 = vmatpush1.bf16.msra.mxu0 0
    %1396 = vmatprep.subr.bf16.mxu0 0
    %1397 = vmatpush1.bf16.msra.mxu0 0
    %1398 = vmatprep.subr.bf16.mxu0 0
    %1399 = vmatpush1.bf16.msra.mxu0 0
    %1400 = vmatprep.subr.bf16.mxu0 0
    %1401 = vmatpush1.bf16.msra.mxu0 0
    %1402 = vmatprep.subr.bf16.mxu0 0
    %1403 = vmatpush1.bf16.msra.mxu0 0
    %1404 = vmatprep.subr.bf16.mxu0 0
    %1405 = vmatpush1.bf16.msra.mxu0 0
    %1406 = vmatprep.subr.bf16.mxu0 0
    %1407 = vmatpush1.bf16.msra.mxu0 0
    %1408 = vmatprep.subr.bf16.mxu0 0
    %1409 = vmatpush1.bf16.msra.mxu0 0
    %1410 = vmatprep.subr.bf16.mxu0 0
    %1411 = vmatpush1.bf16.msra.mxu0 0
    %1412 = vmatprep.subr.bf16.mxu0 0
    %1413 = vmatpush1.bf16.msra.mxu0 0
    %1414 = vmatprep.mubr.bf16.mxu0 0
    %1415 = vmatmul.mubr.bf16.gmra.mrb[0].mxu0 %v1380
    %v1416 = vpop.f32.mrb[0].mxu0
    %v1417 = vadd.f32 %v884, %v1416
    %v1418 = vpop.f32.mrb[0].mxu0
    %v1419 = vpop.f32.mrb[0].mxu0
    %v1420 = vpop.f32.mrb[0].mxu0
    %1421 = vdwg.mxu0
    %v1422 = vadd.f32 %v1417, %v1362
    %v1423 = vxor.u32 %v1422, 2147483648
    %v1424 = vmul.f32 %v1423, 1.442695
    %v1425 = vpow.pop %v1424
    %v1426 = vadd.f32 %v1425, 1.0
    %v1427 = vrcp.pop %v1426
    %v1428 = vmul.f32 1.0, %v1427
    %v1429 = vtanh.pop %v1422
    %v1430 = vmul.f32 %v1428, %v1308
    %1432 = vrot.lane.b32.xlu0 %v1429, 32
    %v1433 = vpop.permute.xlu0 %1432
    %v1435 = vmul.f32 %v1428, %v1433
    %1437 = vrot.lane.b32.xlu0 %v1435, 32
    %v1438 = vpop.permute.xlu0 %1437
    %v1440 = vadd.f32 %v1430, %v1438
    %v1441 = vtanh.pop %v1440
    %1443 = vrot.lane.b32.xlu0 %v1441, 32
    %v1444 = vpop.permute.xlu0 %1443
    %v1446 = vmul.f32 %v1428, %v1444
    %1448 = vrot.lane.b32.xlu0 %v719, 64
    %v1449 = vpop.permute.xlu0 %1448
    %v1451 = vmul.f32 %v1446, %v1449
    %v1452 = vpack.c.bf16 %v1451, %v1451
    %1454 = vrot.lane.b32.xlu0 %v1452, 64
    %v1455 = vpop.permute.xlu0 %1454
    %v1457 = vsel %vm326, %v1455, 0
    %1459 = vmatprep.subr.bf16.mxu0 %v918
    %1460 = vmatpush1.bf16.msra.mxu0 %v917
    %1461 = vmatprep.subr.bf16.mxu0 %v920
    %1462 = vmatpush1.bf16.msra.mxu0 %v919
    %1463 = vmatprep.subr.bf16.mxu0 0
    %1464 = vmatpush1.bf16.msra.mxu0 0
    %1465 = vmatprep.subr.bf16.mxu0 0
    %1466 = vmatpush1.bf16.msra.mxu0 0
    %1467 = vmatprep.subr.bf16.mxu0 0
    %1468 = vmatpush1.bf16.msra.mxu0 0
    %1469 = vmatprep.subr.bf16.mxu0 0
    %1470 = vmatpush1.bf16.msra.mxu0 0
    %1471 = vmatprep.subr.bf16.mxu0 0
    %1472 = vmatpush1.bf16.msra.mxu0 0
    %1473 = vmatprep.subr.bf16.mxu0 0
    %1474 = vmatpush1.bf16.msra.mxu0 0
    %1475 = vmatprep.subr.bf16.mxu0 0
    %1476 = vmatpush1.bf16.msra.mxu0 0
    %1477 = vmatprep.subr.bf16.mxu0 0
    %1478 = vmatpush1.bf16.msra.mxu0 0
    %1479 = vmatprep.subr.bf16.mxu0 0
    %1480 = vmatpush1.bf16.msra.mxu0 0
    %1481 = vmatprep.subr.bf16.mxu0 0
    %1482 = vmatpush1.bf16.msra.mxu0 0
    %1483 = vmatprep.subr.bf16.mxu0 0
    %1484 = vmatpush1.bf16.msra.mxu0 0
    %1485 = vmatprep.subr.bf16.mxu0 0
    %1486 = vmatpush1.bf16.msra.mxu0 0
    %1487 = vmatprep.subr.bf16.mxu0 0
    %1488 = vmatpush1.bf16.msra.mxu0 0
    %1489 = vmatprep.subr.bf16.mxu0 0
    %1490 = vmatpush1.bf16.msra.mxu0 0
    %1491 = vmatprep.mubr.bf16.mxu0 0
    %1492 = vmatmul.mubr.bf16.gmra.mrb[0].mxu0 %v1457
    %v1493 = vpop.f32.mrb[0].mxu0
    %v1494 = vadd.f32 0.0, %v1493
    %v1495 = vpop.f32.mrb[0].mxu0
    %v1496 = vadd.f32 0.0, %v1495
    %v1497 = vpop.f32.mrb[0].mxu0
    %v1498 = vpop.f32.mrb[0].mxu0
    %1499 = vdwg.mxu0
    %v1500 = vadd.f32 %v1496, %v797
    %v1501 = vadd.f32 %v1500, %v561
    %v1502 = vsub.f32 %v568, %v1501
    %v1503 = vand.u32 2147483647, %v1502
    %v1504 = vmul.f32 %v1503, %v584
    %v1505 = vadd.f32 %v1373, %v1504
    %v1506 = vmul.f32 %v576, %v568
    %v1507 = vsub.f32 1.0, %v576
    %v1508 = vmul.f32 %v1507, %v1501
    %v1509 = vadd.f32 %v1506, %v1508
    %v1510 = vpack.c.bf16 %v1509, %v1509
    %v1512 = vsel %vm139, %v1510, 0
    %1514 = vmatprep.subr.bf16.mxu0 0
    %1515 = vmatpush1.bf16.msra.mxu0 %v984
    %1516 = vmatprep.subr.bf16.mxu0 0
    %1517 = vmatpush1.bf16.msra.mxu0 0
    %1518 = vmatprep.subr.bf16.mxu0 0
    %1519 = vmatpush1.bf16.msra.mxu0 0
    %1520 = vmatprep.subr.bf16.mxu0 0
    %1521 = vmatpush1.bf16.msra.mxu0 0
    %1522 = vmatprep.subr.bf16.mxu0 0
    %1523 = vmatpush1.bf16.msra.mxu0 0
    %1524 = vmatprep.subr.bf16.mxu0 0
    %1525 = vmatpush1.bf16.msra.mxu0 0
    %1526 = vmatprep.subr.bf16.mxu0 0
    %1527 = vmatpush1.bf16.msra.mxu0 0
    %1528 = vmatprep.subr.bf16.mxu0 0
    %1529 = vmatpush1.bf16.msra.mxu0 0
    %1530 = vmatprep.subr.bf16.mxu0 0
    %1531 = vmatpush1.bf16.msra.mxu0 0
    %1532 = vmatprep.subr.bf16.mxu0 0
    %1533 = vmatpush1.bf16.msra.mxu0 0
    %1534 = vmatprep.subr.bf16.mxu0 0
    %1535 = vmatpush1.bf16.msra.mxu0 0
    %1536 = vmatprep.subr.bf16.mxu0 0
    %1537 = vmatpush1.bf16.msra.mxu0 0
    %1538 = vmatprep.subr.bf16.mxu0 0
    %1539 = vmatpush1.bf16.msra.mxu0 0
    %1540 = vmatprep.subr.bf16.mxu0 0
    %1541 = vmatpush1.bf16.msra.mxu0 0
    %1542 = vmatprep.subr.bf16.mxu0 0
    %1543 = vmatpush1.bf16.msra.mxu0 0
    %1544 = vmatprep.subr.bf16.mxu0 0
    %1545 = vmatpush1.bf16.msra.mxu0 0
    %1546 = vmatprep.mubr.bf16.mxu0 0
    %1547 = vmatmul.mubr.bf16.gmra.mrb[0].mxu0 %v1512
    %v1548 = vpop.f32.mrb[0].mxu0
    %v1549 = vadd.f32 %v889, %v1548
    %v1550 = vpop.f32.mrb[0].mxu0
    %v1551 = vpop.f32.mrb[0].mxu0
    %v1552 = vpop.f32.mrb[0].mxu0
    %1553 = vdwg.mxu0
    %v1554 = vadd.f32 %v1549, %v1494
    %v1555 = vxor.u32 %v1554, 2147483648
    %v1556 = vmul.f32 %v1555, 1.442695
    %v1557 = vpow.pop %v1556
    %v1558 = vadd.f32 %v1557, 1.0
    %v1559 = vrcp.pop %v1558
    %v1560 = vmul.f32 1.0, %v1559
    %v1561 = vtanh.pop %v1554
    %v1562 = vmul.f32 %v1560, %v1440
    %1564 = vrot.lane.b32.xlu0 %v1561, 32
    %v1565 = vpop.permute.xlu0 %1564
    %v1567 = vmul.f32 %v1560, %v1565
    %1569 = vrot.lane.b32.xlu0 %v1567, 32
    %v1570 = vpop.permute.xlu0 %1569
    %v1572 = vadd.f32 %v1562, %v1570
    %v1573 = vtanh.pop %v1572
    %1575 = vrot.lane.b32.xlu0 %v1573, 32
    %v1576 = vpop.permute.xlu0 %1575
    %v1578 = vmul.f32 %v1560, %v1576
    %1580 = vrot.lane.b32.xlu0 %v721, 64
    %v1581 = vpop.permute.xlu0 %1580
    %v1583 = vmul.f32 %v1578, %v1581
    %v1584 = vpack.c.bf16 %v1583, %v1583
    %1586 = vrot.lane.b32.xlu0 %v1584, 64
    %v1587 = vpop.permute.xlu0 %1586
    %v1589 = vsel %vm326, %v1587, 0
    %1591 = vmatprep.subr.bf16.mxu0 %v918
    %1592 = vmatpush1.bf16.msra.mxu0 %v917
    %1593 = vmatprep.subr.bf16.mxu0 %v920
    %1594 = vmatpush1.bf16.msra.mxu0 %v919
    %1595 = vmatprep.subr.bf16.mxu0 0
    %1596 = vmatpush1.bf16.msra.mxu0 0
    %1597 = vmatprep.subr.bf16.mxu0 0
    %1598 = vmatpush1.bf16.msra.mxu0 0
    %1599 = vmatprep.subr.bf16.mxu0 0
    %1600 = vmatpush1.bf16.msra.mxu0 0
    %1601 = vmatprep.subr.bf16.mxu0 0
    %1602 = vmatpush1.bf16.msra.mxu0 0
    %1603 = vmatprep.subr.bf16.mxu0 0
    %1604 = vmatpush1.bf16.msra.mxu0 0
    %1605 = vmatprep.subr.bf16.mxu0 0
    %1606 = vmatpush1.bf16.msra.mxu0 0
    %1607 = vmatprep.subr.bf16.mxu0 0
    %1608 = vmatpush1.bf16.msra.mxu0 0
    %1609 = vmatprep.subr.bf16.mxu0 0
    %1610 = vmatpush1.bf16.msra.mxu0 0
    %1611 = vmatprep.subr.bf16.mxu0 0
    %1612 = vmatpush1.bf16.msra.mxu0 0
    %1613 = vmatprep.subr.bf16.mxu0 0
    %1614 = vmatpush1.bf16.msra.mxu0 0
    %1615 = vmatprep.subr.bf16.mxu0 0
    %1616 = vmatpush1.bf16.msra.mxu0 0
    %1617 = vmatprep.subr.bf16.mxu0 0
    %1618 = vmatpush1.bf16.msra.mxu0 0
    %1619 = vmatprep.subr.bf16.mxu0 0
    %1620 = vmatpush1.bf16.msra.mxu0 0
    %1621 = vmatprep.subr.bf16.mxu0 0
    %1622 = vmatpush1.bf16.msra.mxu0 0
    %1623 = vmatprep.mubr.bf16.mxu0 0
    %1624 = vmatmul.mubr.bf16.gmra.mrb[0].mxu0 %v1589
    %v1625 = vpop.f32.mrb[0].mxu0
    %v1626 = vadd.f32 0.0, %v1625
    %v1627 = vpop.f32.mrb[0].mxu0
    %v1628 = vadd.f32 0.0, %v1627
    %v1629 = vpop.f32.mrb[0].mxu0
    %v1630 = vpop.f32.mrb[0].mxu0
    %1631 = vdwg.mxu0
    %v1632 = vadd.f32 %v1628, %v800
    %v1633 = vadd.f32 %v1632, %v561
    %v1634 = vsub.f32 %v569, %v1633
    %v1635 = vand.u32 2147483647, %v1634
    %v1636 = vmul.f32 %v1635, %v585
    %v1637 = vadd.f32 %v1505, %v1636
    %v1638 = vmul.f32 %v577, %v569
    %v1639 = vsub.f32 1.0, %v577
    %v1640 = vmul.f32 %v1639, %v1633
    %v1641 = vadd.f32 %v1638, %v1640
    %v1642 = vpack.c.bf16 %v1641, %v1641
    %v1644 = vsel %vm139, %v1642, 0
    %1646 = vmatprep.subr.bf16.mxu0 0
    %1647 = vmatpush1.bf16.msra.mxu0 %v984
    %1648 = vmatprep.subr.bf16.mxu0 0
    %1649 = vmatpush1.bf16.msra.mxu0 0
    %1650 = vmatprep.subr.bf16.mxu0 0
    %1651 = vmatpush1.bf16.msra.mxu0 0
    %1652 = vmatprep.subr.bf16.mxu0 0
    %1653 = vmatpush1.bf16.msra.mxu0 0
    %1654 = vmatprep.subr.bf16.mxu0 0
    %1655 = vmatpush1.bf16.msra.mxu0 0
    %1656 = vmatprep.subr.bf16.mxu0 0
    %1657 = vmatpush1.bf16.msra.mxu0 0
    %1658 = vmatprep.subr.bf16.mxu0 0
    %1659 = vmatpush1.bf16.msra.mxu0 0
    %1660 = vmatprep.subr.bf16.mxu0 0
    %1661 = vmatpush1.bf16.msra.mxu0 0
    %1662 = vmatprep.subr.bf16.mxu0 0
    %1663 = vmatpush1.bf16.msra.mxu0 0
    %1664 = vmatprep.subr.bf16.mxu0 0
    %1665 = vmatpush1.bf16.msra.mxu0 0
    %1666 = vmatprep.subr.bf16.mxu0 0
    %1667 = vmatpush1.bf16.msra.mxu0 0
    %1668 = vmatprep.subr.bf16.mxu0 0
    %1669 = vmatpush1.bf16.msra.mxu0 0
    %1670 = vmatprep.subr.bf16.mxu0 0
    %1671 = vmatpush1.bf16.msra.mxu0 0
    %1672 = vmatprep.subr.bf16.mxu0 0
    %1673 = vmatpush1.bf16.msra.mxu0 0
    %1674 = vmatprep.subr.bf16.mxu0 0
    %1675 = vmatpush1.bf16.msra.mxu0 0
    %1676 = vmatprep.subr.bf16.mxu0 0
    %1677 = vmatpush1.bf16.msra.mxu0 0
    %1678 = vmatprep.mubr.bf16.mxu0 0
    %1679 = vmatmul.mubr.bf16.gmra.mrb[0].mxu0 %v1644
    %v1680 = vpop.f32.mrb[0].mxu0
    %v1681 = vadd.f32 %v892, %v1680
    %v1682 = vpop.f32.mrb[0].mxu0
    %v1683 = vpop.f32.mrb[0].mxu0
    %v1684 = vpop.f32.mrb[0].mxu0
    %1685 = vdwg.mxu0
    %v1686 = vadd.f32 %v1681, %v1626
    %v1687 = vxor.u32 %v1686, 2147483648
    %v1688 = vmul.f32 %v1687, 1.442695
    %v1689 = vpow.pop %v1688
    %v1690 = vadd.f32 %v1689, 1.0
    %v1691 = vrcp.pop %v1690
    %v1692 = vmul.f32 1.0, %v1691
    %v1693 = vtanh.pop %v1686
    %v1694 = vmul.f32 %v1692, %v1572
    %1696 = vrot.lane.b32.xlu0 %v1693, 32
    %v1697 = vpop.permute.xlu0 %1696
    %v1699 = vmul.f32 %v1692, %v1697
    %1701 = vrot.lane.b32.xlu0 %v1699, 32
    %v1702 = vpop.permute.xlu0 %1701
    %v1704 = vadd.f32 %v1694, %v1702
    %v1705 = vtanh.pop %v1704
    %1707 = vrot.lane.b32.xlu0 %v1705, 32
    %v1708 = vpop.permute.xlu0 %1707
    %v1710 = vmul.f32 %v1692, %v1708
    %1712 = vrot.lane.b32.xlu0 %v723, 64
    %v1713 = vpop.permute.xlu0 %1712
    %v1715 = vmul.f32 %v1710, %v1713
    %v1716 = vpack.c.bf16 %v1715, %v1715
    %1718 = vrot.lane.b32.xlu0 %v1716, 64
    %v1719 = vpop.permute.xlu0 %1718
    %v1721 = vsel %vm326, %v1719, 0
    %1723 = vmatprep.subr.bf16.mxu0 %v918
    %1724 = vmatpush1.bf16.msra.mxu0 %v917
    %1725 = vmatprep.subr.bf16.mxu0 %v920
    %1726 = vmatpush1.bf16.msra.mxu0 %v919
    %1727 = vmatprep.subr.bf16.mxu0 0
    %1728 = vmatpush1.bf16.msra.mxu0 0
    %1729 = vmatprep.subr.bf16.mxu0 0
    %1730 = vmatpush1.bf16.msra.mxu0 0
    %1731 = vmatprep.subr.bf16.mxu0 0
    %1732 = vmatpush1.bf16.msra.mxu0 0
    %1733 = vmatprep.subr.bf16.mxu0 0
    %1734 = vmatpush1.bf16.msra.mxu0 0
    %1735 = vmatprep.subr.bf16.mxu0 0
    %1736 = vmatpush1.bf16.msra.mxu0 0
    %1737 = vmatprep.subr.bf16.mxu0 0
    %1738 = vmatpush1.bf16.msra.mxu0 0
    %1739 = vmatprep.subr.bf16.mxu0 0
    %1740 = vmatpush1.bf16.msra.mxu0 0
    %1741 = vmatprep.subr.bf16.mxu0 0
    %1742 = vmatpush1.bf16.msra.mxu0 0
    %1743 = vmatprep.subr.bf16.mxu0 0
    %1744 = vmatpush1.bf16.msra.mxu0 0
    %1745 = vmatprep.subr.bf16.mxu0 0
    %1746 = vmatpush1.bf16.msra.mxu0 0
    %1747 = vmatprep.subr.bf16.mxu0 0
    %1748 = vmatpush1.bf16.msra.mxu0 0
    %1749 = vmatprep.subr.bf16.mxu0 0
    %1750 = vmatpush1.bf16.msra.mxu0 0
    %1751 = vmatprep.subr.bf16.mxu0 0
    %1752 = vmatpush1.bf16.msra.mxu0 0
    %1753 = vmatprep.subr.bf16.mxu0 0
    %1754 = vmatpush1.bf16.msra.mxu0 0
    %1755 = vmatprep.mubr.bf16.mxu0 0
    %1756 = vmatmul.mubr.bf16.gmra.mrb[0].mxu0 %v1721
    %v1757 = vpop.f32.mrb[0].mxu0
    %v1758 = vadd.f32 0.0, %v1757
    %v1759 = vpop.f32.mrb[0].mxu0
    %v1760 = vadd.f32 0.0, %v1759
    %v1761 = vpop.f32.mrb[0].mxu0
    %v1762 = vpop.f32.mrb[0].mxu0
    %1763 = vdwg.mxu0
    %v1764 = vadd.f32 %v1760, %v805
    %v1765 = vadd.f32 %v1764, %v561
    %v1766 = vsub.f32 %v570, %v1765
    %v1767 = vand.u32 2147483647, %v1766
    %v1768 = vmul.f32 %v1767, %v586
    %v1769 = vadd.f32 %v1637, %v1768
    %v1770 = vmul.f32 %v578, %v570
    %v1771 = vsub.f32 1.0, %v578
    %v1772 = vmul.f32 %v1771, %v1765
    %v1773 = vadd.f32 %v1770, %v1772
    %v1774 = vpack.c.bf16 %v1773, %v1773
    %v1776 = vsel %vm139, %v1774, 0
    %1778 = vmatprep.subr.bf16.mxu0 0
    %1779 = vmatpush1.bf16.msra.mxu0 %v984
    %1780 = vmatprep.subr.bf16.mxu0 0
    %1781 = vmatpush1.bf16.msra.mxu0 0
    %1782 = vmatprep.subr.bf16.mxu0 0
    %1783 = vmatpush1.bf16.msra.mxu0 0
    %1784 = vmatprep.subr.bf16.mxu0 0
    %1785 = vmatpush1.bf16.msra.mxu0 0
    %1786 = vmatprep.subr.bf16.mxu0 0
    %1787 = vmatpush1.bf16.msra.mxu0 0
    %1788 = vmatprep.subr.bf16.mxu0 0
    %1789 = vmatpush1.bf16.msra.mxu0 0
    %1790 = vmatprep.subr.bf16.mxu0 0
    %1791 = vmatpush1.bf16.msra.mxu0 0
    %1792 = vmatprep.subr.bf16.mxu0 0
    %1793 = vmatpush1.bf16.msra.mxu0 0
    %1794 = vmatprep.subr.bf16.mxu0 0
    %1795 = vmatpush1.bf16.msra.mxu0 0
    %1796 = vmatprep.subr.bf16.mxu0 0
    %1797 = vmatpush1.bf16.msra.mxu0 0
    %1798 = vmatprep.subr.bf16.mxu0 0
    %1799 = vmatpush1.bf16.msra.mxu0 0
    %1800 = vmatprep.subr.bf16.mxu0 0
    %1801 = vmatpush1.bf16.msra.mxu0 0
    %1802 = vmatprep.subr.bf16.mxu0 0
    %1803 = vmatpush1.bf16.msra.mxu0 0
    %1804 = vmatprep.subr.bf16.mxu0 0
    %1805 = vmatpush1.bf16.msra.mxu0 0
    %1806 = vmatprep.subr.bf16.mxu0 0
    %1807 = vmatpush1.bf16.msra.mxu0 0
    %1808 = vmatprep.subr.bf16.mxu0 0
    %1809 = vmatpush1.bf16.msra.mxu0 0
    %1810 = vmatprep.mubr.bf16.mxu0 0
    %1811 = vmatmul.mubr.bf16.gmra.mrb[0].mxu0 %v1776
    %v1812 = vpop.f32.mrb[0].mxu0
    %v1813 = vadd.f32 %v897, %v1812
    %v1814 = vpop.f32.mrb[0].mxu0
    %v1815 = vpop.f32.mrb[0].mxu0
    %v1816 = vpop.f32.mrb[0].mxu0
    %1817 = vdwg.mxu0
    %v1818 = vadd.f32 %v1813, %v1758
    %v1819 = vxor.u32 %v1818, 2147483648
    %v1820 = vmul.f32 %v1819, 1.442695
    %v1821 = vpow.pop %v1820
    %v1822 = vadd.f32 %v1821, 1.0
    %v1823 = vrcp.pop %v1822
    %v1824 = vmul.f32 1.0, %v1823
    %v1825 = vtanh.pop %v1818
    %v1826 = vmul.f32 %v1824, %v1704
    %1828 = vrot.lane.b32.xlu0 %v1825, 32
    %v1829 = vpop.permute.xlu0 %1828
    %v1831 = vmul.f32 %v1824, %v1829
    %1833 = vrot.lane.b32.xlu0 %v1831, 32
    %v1834 = vpop.permute.xlu0 %1833
    %v1836 = vadd.f32 %v1826, %v1834
    %v1837 = vtanh.pop %v1836
    %1839 = vrot.lane.b32.xlu0 %v1837, 32
    %v1840 = vpop.permute.xlu0 %1839
    %v1842 = vmul.f32 %v1824, %v1840
    %1844 = vrot.lane.b32.xlu0 %v725, 64
    %v1845 = vpop.permute.xlu0 %1844
    %v1847 = vmul.f32 %v1842, %v1845
    %v1848 = vpack.c.bf16 %v1847, %v1847
    %1850 = vrot.lane.b32.xlu0 %v1848, 64
    %v1851 = vpop.permute.xlu0 %1850
    %v1853 = vsel %vm326, %v1851, 0
    %1855 = vmatprep.subr.bf16.mxu0 %v918
    %1856 = vmatpush1.bf16.msra.mxu0 %v917
    %1857 = vmatprep.subr.bf16.mxu0 %v920
    %1858 = vmatpush1.bf16.msra.mxu0 %v919
    %1859 = vmatprep.subr.bf16.mxu0 0
    %1860 = vmatpush1.bf16.msra.mxu0 0
    %1861 = vmatprep.subr.bf16.mxu0 0
    %1862 = vmatpush1.bf16.msra.mxu0 0
    %1863 = vmatprep.subr.bf16.mxu0 0
    %1864 = vmatpush1.bf16.msra.mxu0 0
    %1865 = vmatprep.subr.bf16.mxu0 0
    %1866 = vmatpush1.bf16.msra.mxu0 0
    %1867 = vmatprep.subr.bf16.mxu0 0
    %1868 = vmatpush1.bf16.msra.mxu0 0
    %1869 = vmatprep.subr.bf16.mxu0 0
    %1870 = vmatpush1.bf16.msra.mxu0 0
    %1871 = vmatprep.subr.bf16.mxu0 0
    %1872 = vmatpush1.bf16.msra.mxu0 0
    %1873 = vmatprep.subr.bf16.mxu0 0
    %1874 = vmatpush1.bf16.msra.mxu0 0
    %1875 = vmatprep.subr.bf16.mxu0 0
    %1876 = vmatpush1.bf16.msra.mxu0 0
    %1877 = vmatprep.subr.bf16.mxu0 0
    %1878 = vmatpush1.bf16.msra.mxu0 0
    %1879 = vmatprep.subr.bf16.mxu0 0
    %1880 = vmatpush1.bf16.msra.mxu0 0
    %1881 = vmatprep.subr.bf16.mxu0 0
    %1882 = vmatpush1.bf16.msra.mxu0 0
    %1883 = vmatprep.subr.bf16.mxu0 0
    %1884 = vmatpush1.bf16.msra.mxu0 0
    %1885 = vmatprep.subr.bf16.mxu0 0
    %1886 = vmatpush1.bf16.msra.mxu0 0
    %1887 = vmatprep.mubr.bf16.mxu0 0
    %1888 = vmatmul.mubr.bf16.gmra.mrb[0].mxu0 %v1853
    %v1889 = vpop.f32.mrb[0].mxu0
    %v1890 = vadd.f32 0.0, %v1889
    %v1891 = vpop.f32.mrb[0].mxu0
    %v1892 = vadd.f32 0.0, %v1891
    %v1893 = vpop.f32.mrb[0].mxu0
    %v1894 = vpop.f32.mrb[0].mxu0
    %1895 = vdwg.mxu0
    %v1896 = vadd.f32 %v1892, %v808
    %v1897 = vadd.f32 %v1896, %v561
    %v1898 = vsub.f32 %v571, %v1897
    %v1899 = vand.u32 2147483647, %v1898
    %v1900 = vmul.f32 %v1899, %v587
    %v1901 = vadd.f32 %v1769, %v1900
    %v1902 = vmul.f32 %v579, %v571
    %v1903 = vsub.f32 1.0, %v579
    %v1904 = vmul.f32 %v1903, %v1897
    %v1905 = vadd.f32 %v1902, %v1904
    %v1906 = vpack.c.bf16 %v1905, %v1905
    %v1908 = vsel %vm139, %v1906, 0
    %1910 = vmatprep.subr.bf16.mxu0 0
    %1911 = vmatpush1.bf16.msra.mxu0 %v984
    %1912 = vmatprep.subr.bf16.mxu0 0
    %1913 = vmatpush1.bf16.msra.mxu0 0
    %1914 = vmatprep.subr.bf16.mxu0 0
    %1915 = vmatpush1.bf16.msra.mxu0 0
    %1916 = vmatprep.subr.bf16.mxu0 0
    %1917 = vmatpush1.bf16.msra.mxu0 0
    %1918 = vmatprep.subr.bf16.mxu0 0
    %1919 = vmatpush1.bf16.msra.mxu0 0
    %1920 = vmatprep.subr.bf16.mxu0 0
    %1921 = vmatpush1.bf16.msra.mxu0 0
    %1922 = vmatprep.subr.bf16.mxu0 0
    %1923 = vmatpush1.bf16.msra.mxu0 0
    %1924 = vmatprep.subr.bf16.mxu0 0
    %1925 = vmatpush1.bf16.msra.mxu0 0
    %1926 = vmatprep.subr.bf16.mxu0 0
    %1927 = vmatpush1.bf16.msra.mxu0 0
    %1928 = vmatprep.subr.bf16.mxu0 0
    %1929 = vmatpush1.bf16.msra.mxu0 0
    %1930 = vmatprep.subr.bf16.mxu0 0
    %1931 = vmatpush1.bf16.msra.mxu0 0
    %1932 = vmatprep.subr.bf16.mxu0 0
    %1933 = vmatpush1.bf16.msra.mxu0 0
    %1934 = vmatprep.subr.bf16.mxu0 0
    %1935 = vmatpush1.bf16.msra.mxu0 0
    %1936 = vmatprep.subr.bf16.mxu0 0
    %1937 = vmatpush1.bf16.msra.mxu0 0
    %1938 = vmatprep.subr.bf16.mxu0 0
    %1939 = vmatpush1.bf16.msra.mxu0 0
    %1940 = vmatprep.subr.bf16.mxu0 0
    %1941 = vmatpush1.bf16.msra.mxu0 0
    %1942 = vmatprep.mubr.bf16.mxu0 0
    %1943 = vmatmul.mubr.bf16.gmra.mrb[0].mxu0 %v1908
    %v1944 = vpop.f32.mrb[0].mxu0
    %v1945 = vadd.f32 %v900, %v1944
    %v1946 = vpop.f32.mrb[0].mxu0
    %v1947 = vpop.f32.mrb[0].mxu0
    %v1948 = vpop.f32.mrb[0].mxu0
    %1949 = vdwg.mxu0
    %v1950 = vadd.f32 %v1945, %v1890
    %v1951 = vxor.u32 %v1950, 2147483648
    %v1952 = vmul.f32 %v1951, 1.442695
    %v1953 = vpow.pop %v1952
    %v1954 = vadd.f32 %v1953, 1.0
    %v1955 = vrcp.pop %v1954
    %v1956 = vmul.f32 1.0, %v1955
    %v1957 = vtanh.pop %v1950
    %v1958 = vmul.f32 %v1956, %v1836
    %1960 = vrot.lane.b32.xlu0 %v1957, 32
    %v1961 = vpop.permute.xlu0 %1960
    %v1963 = vmul.f32 %v1956, %v1961
    %1965 = vrot.lane.b32.xlu0 %v1963, 32
    %v1966 = vpop.permute.xlu0 %1965
    %v1968 = vadd.f32 %v1958, %v1966
    %v1969 = vtanh.pop %v1968
    %1971 = vrot.lane.b32.xlu0 %v1969, 32
    %v1972 = vpop.permute.xlu0 %1971
    %v1974 = vmul.f32 %v1956, %v1972
    %1976 = vrot.lane.b32.xlu0 %v1113, 8
    %v1977 = vpop.permute.xlu0 %1976
    %1980 = vrot.lane.b32.xlu0 %v1245, 16
    %v1981 = vpop.permute.xlu0 %1980
    %1984 = vrot.lane.b32.xlu0 %v1377, 24
    %v1985 = vpop.permute.xlu0 %1984
    %1988 = vrot.lane.b32.xlu0 %v1509, 32
    %v1989 = vpop.permute.xlu0 %1988
    %1992 = vrot.lane.b32.xlu0 %v1641, 40
    %v1993 = vpop.permute.xlu0 %1992
    %1996 = vrot.lane.b32.xlu0 %v1773, 48
    %v1997 = vpop.permute.xlu0 %1996
    %2000 = vrot.lane.b32.xlu0 %v1905, 56
    %v2001 = vpop.permute.xlu0 %2000
    %v2003 = vsel %vm139, %v978, %v1977
    %vm2004 = vcmask 130048
    %v2005 = vsel %vm2004, %v2003, %v1981
    %vm2006 = vcmask 195584
    %v2007 = vsel %vm2006, %v2005, %v1985
    %v2008 = vsel %vm326, %v2007, %v1989
    %vm2009 = vcmask 326656
    %v2010 = vsel %vm2009, %v2008, %v1993
    %vm2011 = vcmask 392192
    %v2012 = vsel %vm2011, %v2010, %v1997
    %vm2013 = vcmask 457728
    %v2014 = vsel %vm2013, %v2012, %v2001
    %vm2015 = vcmask 523264
    %2016 = vst.msk [vmem:[%s57] sm:$0xff] %vm2015, %v2014
    %v2017 = vsel %vm139, %v1901, 0.0
    %2018 = vadd.xlane.f32.xlu0 %v2017
    %v2019 = vpop.xlane.xlu0 %2018
    %v2020 = vrot.slane %v2019, 4
    %v2021 = vadd.f32 %v2019, %v2020
    %v2022 = vrot.slane %v2021, 2
    %v2023 = vadd.f32 %v2021, %v2022
    %v2024 = vrot.slane %v2023, 1
    %v2025 = vadd.f32 %v2023, %v2024
    %s2026 = vtos %v2025
    %v2027 = vstv %s2026
    %v2028 = vld [vmem:[%s53] sm:$0xff]
    %v2029 = vld [vmem:[%s53 + $0x8] sm:$0xff]
    %v2030 = vld [vmem:[%s53 + $0x10] sm:$0xff]
    %v2031 = vld [vmem:[%s53 + $0x18] sm:$0xff]
    %v2032 = vld [vmem:[#allocation3] sm:$0x1]
    %v2034 = vlaneseq
    %v2035 = vshrl.u32 %v2034, 7
    %v2036 = vsub.s32 0, %v2035
    %v2037 = vrot.slane %v2032, %v2036
    %2040 = vrot.lane.b32.xlu0 %v1974, 64
    %v2041 = vpop.permute.xlu0 %2040
    %v2042 = vsel %vm326, %v2041, 0
    %2044 = vmatprep.subr.mxu0 0.0
    %2045 = vmatpush1.msra.mxu0 %v2028
    %2046 = vmatprep.subr.mxu0 0.0
    %2047 = vmatpush1.msra.mxu0 %v2029
    %2048 = vmatprep.subr.mxu0 0.0
    %2049 = vmatpush1.msra.mxu0 %v2030
    %2050 = vmatprep.subr.mxu0 0.0
    %2051 = vmatpush1.msra.mxu0 %v2031
    %2052 = vmatprep.subr.mxu0 0.0
    %2053 = vmatpush1.msra.mxu0 0.0
    %2054 = vmatprep.subr.mxu0 0.0
    %2055 = vmatpush1.msra.mxu0 0.0
    %2056 = vmatprep.subr.mxu0 0.0
    %2057 = vmatpush1.msra.mxu0 0.0
    %2058 = vmatprep.subr.mxu0 0.0
    %2059 = vmatpush1.msra.mxu0 0.0
    %2060 = vmatprep.subr.mxu0 0.0
    %2061 = vmatpush1.msra.mxu0 0.0
    %2062 = vmatprep.subr.mxu0 0.0
    %2063 = vmatpush1.msra.mxu0 0.0
    %2064 = vmatprep.subr.mxu0 0.0
    %2065 = vmatpush1.msra.mxu0 0.0
    %2066 = vmatprep.subr.mxu0 0.0
    %2067 = vmatpush1.msra.mxu0 0.0
    %2068 = vmatprep.subr.mxu0 0.0
    %2069 = vmatpush1.msra.mxu0 0.0
    %2070 = vmatprep.subr.mxu0 0.0
    %2071 = vmatpush1.msra.mxu0 0.0
    %2072 = vmatprep.subr.mxu0 0.0
    %2073 = vmatpush1.msra.mxu0 0.0
    %2074 = vmatprep.subr.mxu0 0.0
    %2075 = vmatpush1.msra.mxu0 0.0
    %2076 = vmatprep.subr.mxu0 0.0
    %2077 = vmatpush1.msra.mxu0 0.0
    %2078 = vmatprep.subr.mxu0 0.0
    %2079 = vmatpush1.msra.mxu0 0.0
    %2080 = vmatprep.subr.mxu0 0.0
    %2081 = vmatpush1.msra.mxu0 0.0
    %2082 = vmatprep.subr.mxu0 0.0
    %2083 = vmatpush1.msra.mxu0 0.0
    %2084 = vmatprep.subr.mxu0 0.0
    %2085 = vmatpush1.msra.mxu0 0.0
    %2086 = vmatprep.subr.mxu0 0.0
    %2087 = vmatpush1.msra.mxu0 0.0
    %2088 = vmatprep.subr.mxu0 0.0
    %2089 = vmatpush1.msra.mxu0 0.0
    %2090 = vmatprep.subr.mxu0 0.0
    %2091 = vmatpush1.msra.mxu0 0.0
    %2092 = vmatprep.subr.mxu0 0.0
    %2093 = vmatpush1.msra.mxu0 0.0
    %2094 = vmatprep.subr.mxu0 0.0
    %2095 = vmatpush1.msra.mxu0 0.0
    %2096 = vmatprep.subr.mxu0 0.0
    %2097 = vmatpush1.msra.mxu0 0.0
    %2098 = vmatprep.subr.mxu0 0.0
    %2099 = vmatpush1.msra.mxu0 0.0
    %2100 = vmatprep.subr.mxu0 0.0
    %2101 = vmatpush1.msra.mxu0 0.0
    %2102 = vmatprep.subr.mxu0 0.0
    %2103 = vmatpush1.msra.mxu0 0.0
    %2104 = vmatprep.subr.mxu0 0.0
    %2105 = vmatpush1.msra.mxu0 0.0
    %2106 = vmatprep.subr.mxu0 0.0
    %2107 = vmatpush1.msra.mxu0 0.0
    %2108 = vmatprep.mubr.f32.mxu0 0.0
    %2109 = vmatmul.mubr.f32.gmra.mrb[0].mxu0 %v2042
    %v2110 = vpop.f32.mrb[0].mxu0
    %v2111 = vadd.f32 %v2037, %v2110
    %v2112 = vpop.f32.mrb[0].mxu0
    %2113 = vdwg.mxu0
    %v2114 = vld [vmem:[%s15] sm:$0xff]
    %v2115 = vld [vmem:[%s17] sm:$0xff]
    %v2116 = vmax.f32 %v2111, 0.0
    %v2117 = vmul.f32 %v2111, %v2114
    %v2118 = vsub.f32 %v2116, %v2117
    %v2119 = vand.u32 2147483647, %v2111
    %v2120 = vsub.f32 0.0, %v2119
    %v2121 = vmul.f32 %v2120, 1.442695
    %v2122 = vpow.pop %v2121
    %v2123 = vadd.f32 %v2122, 1.0
    %v2124 = vlog2.pop %v2123
    %v2125 = vmul.f32 %v2124, 0.6931472
    %v2126 = vadd.f32 %v2118, %v2125
    %v2127 = vmul.f32 %v2126, %v2115
    %vm2128 = vcmask 7168
    %v2129 = vsel %vm2128, %v2127, 0.0
    %2130 = vadd.xlane.f32.xlu0 %v2129
    %v2131 = vpop.xlane.xlu0 %2130
    %v2132 = vrot.slane %v2131, 4
    %v2133 = vadd.f32 %v2131, %v2132
    %v2134 = vrot.slane %v2133, 2
    %v2135 = vadd.f32 %v2133, %v2134
    %v2136 = vrot.slane %v2135, 1
    %v2137 = vadd.f32 %v2135, %v2136
    %s2138 = vtos %v2137
    %v2139 = vstv %s2138
    %v2140 = vmul.f32 %v2139, 0.25
    %v2141 = vmul.f32 %v2027, 0.3
    %v2142 = vadd.f32 %v2140, %v2141
    %v2143 = vadd.f32 %v2142, %v232
    %vm2144 = vcmask 0
    %2145 = vst.msk [vmem:[#allocation4] sm:$0x1] %vm2144, %v2143
    %v2146 = vxor.u32 %v2111, 2147483648
    %v2147 = vmul.f32 %v2146, 1.442695
    %v2148 = vpow.pop %v2147
    %v2149 = vadd.f32 %v2148, 1.0
    %v2150 = vrcp.pop %v2149
    %v2151 = vmul.f32 1.0, %v2150
    %2152 = vst.msk [vmem:[%s59] sm:$0xff] %vm2128, %v2151
    // Predicated region
    $region114: #{crossnet_forward.1} parent=1 // pred_check
      _
    $region115: #{crossnet_forward.1} parent=1 // pred_check_branch
      %2154 = sbr.rel (0) target = $region117
    $region116: #{crossnet_forward.1} parent=1 // pred_region
      _
    $region117: #{crossnet_forward.1} parent=1 // pred_fallthru
      _
    // Predicated region
    $region118: #{crossnet_forward.1} parent=1 // pred_check
      _
    $region119: #{crossnet_forward.1} parent=1 // pred_check_branch
      %2156 = sbr.rel (0) target = $region121
    $region120: #{crossnet_forward.1} parent=1 // pred_region
      _
    $region121: #{crossnet_forward.1} parent=1 // pred_fallthru
      _
    // Predicated region
    $region122: #{crossnet_forward.1} parent=1 // pred_check
      _
    $region123: #{crossnet_forward.1} parent=1 // pred_check_branch
      %2158 = sbr.rel (0) target = $region125
    $region124: #{crossnet_forward.1} parent=1 // pred_region
      %s2160 = ssub.s32 16, 16
      %2161 = vsyncadd [#allocation5], %s2160
      %s2163 = sshll.u32 [#allocation4], 4
      %s2164 = int_to_ptr.vmem [resolvable:$true] %s2163
      %2166 = dma.vmem_to_hbm [thread:$0]  %s2164, 16, %s61, [#allocation5]
    $region125: #{crossnet_forward.1} parent=1 // pred_fallthru
      _
    // Predicated region
    $region126: #{crossnet_forward.1} parent=1 // pred_check
      _
    $region127: #{crossnet_forward.1} parent=1 // pred_check_branch
      %2168 = sbr.rel (0) target = $region129
    $region128: #{crossnet_forward.1} parent=1 // pred_region
      _
    $region129: #{crossnet_forward.1} parent=1 // pred_fallthru
      _
    // Predicated region
    $region130: #{crossnet_forward.1} parent=1 // pred_check
      _
    $region131: #{crossnet_forward.1} parent=1 // pred_check_branch
      %2170 = sbr.rel (0) target = $region133
    $region132: #{crossnet_forward.1} parent=1 // pred_region
      _
    $region133: #{crossnet_forward.1} parent=1 // pred_fallthru
      _
    // Predicated region
    $region134: #{crossnet_forward.1} parent=1 // pred_check
      _
    $region135: #{crossnet_forward.1} parent=1 // pred_check_branch
      %2172 = sbr.rel (0) target = $region137
    $region136: #{crossnet_forward.1} parent=1 // pred_region
      %2173 = dma.done [#allocation5], 16
    $region137: #{crossnet_forward.1} parent=1 // pred_fallthru
      _
    %2174 = vsyncpa [#allocation5], 1

</llo_original>
